<compile_context>
chip_gen: v7x
topology: tpu7x:2x2x1
jax: 0.10.0
libtpu: 0.0.40
codegen_flags: <defaults>
</compile_context>

<pallas_src>
import functools

import jax
import jax.numpy as jnp
from jax.experimental import pallas as pl
from jax.experimental.pallas import tpu as pltpu

NEG_SLOPE = 0.01  # nn.LeakyReLU default
BN_EPS = 1e-5     # nn.BatchNorm2d default


def _leaky_relu(x):
    return jnp.where(x >= 0, x, NEG_SLOPE * x)


# --------------------------- Pallas kernel ----------------------------------

def teacher_kernel(x_ref, mask_ref, w1_ref, b1_ref, wblk_ref, scale_ref, shift_ref,
                   out1_ref, out2_ref, out3_ref, *, num_blocks, Wp, LB, hw_inv):
    """Fused Teacher forward for Nb images folded into the lane axis.

    x_ref:     (Cin_p, Nb*LB)   bf16 flat padded-grid input (zeros at pads/dead lanes)
    mask_ref:  (1, Nb*LB)       f32, 1.0 at interior grid positions, 0.0 elsewhere
    w1_ref:    (C1_p, 9*Cin_p)  conv_1 taps stacked along K (bf16)
    b1_ref:    (C1_p, 1)        conv_1 bias (f32)
    wblk_ref:  (L, C1_p, 9*C1_p) block conv taps stacked along K (bf16)
    scale_ref: (L, C1_p, 1)     BatchNorm eval scale (f32)
    shift_ref: (L, C1_p, 1)     BatchNorm eval shift (f32)
    out1_ref:  (C1_p, Nb*LB)    out_1 in flat padded-grid layout (f32)
    out2_ref:  (C1_p, Nb*LB)    out_2 in flat padded-grid layout (f32)
    out3_ref:  (1, C1_p, Nb)    per-image spatial means (out_3, f32)
    """
    NL = x_ref.shape[-1]
    Nb = NL // LB
    mask = mask_ref[...]                                     # (1, NL) f32

    def conv3x3(a, w_stacked):
        # a: (Cp, NL) f32 ; w_stacked: (Coutp, 9*Cp) bf16, columns ordered (kh, kw, ci).
        # Build the tap-stacked RHS from lane-rolled copies; wrap-around only
        # pollutes pad/dead lanes (re-zeroed by `mask` after every layer).
        pieces = []
        for kh in range(3):
            for kw in range(3):
                e = (kh - 1) * Wp + (kw - 1)                 # flat tap offset
                pieces.append(a if e == 0
                              else pltpu.roll(a, shift=(-e) % NL, axis=1))
        rhs = jnp.concatenate(pieces, axis=0).astype(jnp.bfloat16)   # (9*Cp, NL), 1 cast
        return jnp.dot(w_stacked, rhs, preferred_element_type=jnp.float32)

    x = x_ref[...].astype(jnp.float32)                       # (Cin_p, NL)

    # ---- conv_1 (bias) -> LeakyReLU -> Dropout(identity) ----
    a = conv3x3(x, w1_ref[...]) + b1_ref[...]
    a = _leaky_relu(a) * mask                                # re-zero padding
    out1_ref[...] = a.astype(out1_ref.dtype)

    # ---- num_conv x [conv(no bias) -> LeakyReLU -> BN(eval) -> Dropout(id)] ----
    for l in range(num_blocks):
        a = conv3x3(a, wblk_ref[l])
        a = (_leaky_relu(a) * scale_ref[l] + shift_ref[l]) * mask
    out2_ref[...] = a.astype(out2_ref.dtype)

    # ---- fused per-image spatial mean (pads/dead lanes are exactly 0) ----
    lane_idx = jax.lax.broadcasted_iota(jnp.int32, (1, Nb), 1)
    acc3 = jnp.zeros((a.shape[0], Nb), jnp.float32)
    for n in range(Nb):
        s_n = jnp.sum(a[:, n * LB:(n + 1) * LB], axis=1, keepdims=True)   # (Cp, 1)
        acc3 = acc3 + s_n * (lane_idx == n).astype(jnp.float32)
    out3_ref[0] = (acc3 * hw_inv).astype(out3_ref.dtype)


# --------------------------- wrapper (glue) ----------------------------------

def teacher_forward(x_nchw, params, *, batch_block=8):
    N, Cin, H, W = x_nchw.shape
    Wp = W + 2
    Lgrid = (H + 2) * Wp
    LB = ((Lgrid + 127) // 128) * 128                        # lane-aligned flat length

    f32, bf16 = jnp.float32, jnp.bfloat16

    def rup(v, m):
        return ((v + m - 1) // m) * m

    C1 = params["conv1_w"].shape[-1]
    num_conv = len(params["blocks"])
    Cin_p = rup(Cin, 8)                                      # pad channels to sublane tile
    C1_p = rup(C1, 8)

    Nb = max(1, min(batch_block, N))                         # images per grid step
    Npad = rup(N, Nb)
    nsteps = Npad // Nb
    NL = Nb * LB

    # ---- input: flat padded grid, channel-padded, batch folded into lanes, bf16 ----
    xpad = jnp.pad(x_nchw.astype(f32),
                   ((0, Npad - N), (0, 0), (1, 1), (1, 1)))               # (Npad,Cin,H+2,Wp)
    xflat = jnp.pad(xpad.reshape(Npad, Cin, Lgrid),
                    ((0, 0), (0, Cin_p - Cin), (0, LB - Lgrid)))          # (Npad,Cin_p,LB)
    x_buf = jnp.transpose(xflat, (1, 0, 2)).reshape(Cin_p, Npad * LB).astype(bf16)

    # ---- interior mask, tiled over the Nb images of one block ----
    g = jnp.arange(LB)
    hp, wp = g // Wp, g % Wp
    interior = (g < Lgrid) & (hp >= 1) & (hp <= H) & (wp >= 1) & (wp <= W)
    mask = jnp.tile(interior.astype(f32).reshape(1, LB), (1, Nb))         # (1, NL)

    # ---- weights: 9 taps stacked along K -> one (Coutp, 9*Cinp) bf16 matrix per layer ----
    # NOTE: conv weights are (kh, kw, Cin, Cout); PyTorch (Cout,Cin,3,3) must be
    # permuted (not reshaped) into this layout before calling.
    def stack_taps(w, ci_p, co_p):
        ci, co = w.shape[2], w.shape[3]
        wpd = jnp.pad(w.astype(f32), ((0, 0), (0, 0), (0, ci_p - ci), (0, co_p - co)))
        return wpd.reshape(9 * ci_p, co_p).T.astype(bf16)                 # (co_p, 9*ci_p)

    w1 = stack_taps(params["conv1_w"], Cin_p, C1_p)
    b1 = jnp.pad(params["conv1_b"].astype(f32), (0, C1_p - C1)).reshape(C1_p, 1)

    if num_conv:
        wblk = jnp.stack([stack_taps(blk["w"], C1_p, C1_p) for blk in params["blocks"]])
        scales, shifts = [], []
        for blk in params["blocks"]:
            s = blk["gamma"] / jnp.sqrt(blk["var"] + BN_EPS)
            t = blk["beta"] - blk["mean"] * s
            scales.append(jnp.pad(s, (0, C1_p - C1), constant_values=1.0).reshape(C1_p, 1))
            shifts.append(jnp.pad(t, (0, C1_p - C1)).reshape(C1_p, 1))
        scale = jnp.stack(scales).astype(f32)
        shift = jnp.stack(shifts).astype(f32)
    else:  # dummy (unused) weights so the pallas_call signature stays static
        wblk = jnp.zeros((1, C1_p, 9 * C1_p), bf16)
        scale = jnp.ones((1, C1_p, 1), f32)
        shift = jnp.zeros((1, C1_p, 1), f32)

    kernel = functools.partial(teacher_kernel, num_blocks=num_conv, Wp=Wp, LB=LB,
                               hw_inv=1.0 / float(H * W))

    out1_buf, out2_buf, out3_buf = pl.pallas_call(
        kernel,
        out_shape=(jax.ShapeDtypeStruct((C1_p, Npad * LB), f32),
                   jax.ShapeDtypeStruct((C1_p, Npad * LB), f32),
                   jax.ShapeDtypeStruct((nsteps, C1_p, Nb), f32)),
        grid=(nsteps,),
        in_specs=[
            pl.BlockSpec((Cin_p, NL), lambda b: (0, b)),
            pl.BlockSpec((1, NL), lambda b: (0, 0)),
            pl.BlockSpec(w1.shape, lambda b: (0, 0)),
            pl.BlockSpec(b1.shape, lambda b: (0, 0)),
            pl.BlockSpec(wblk.shape, lambda b: (0, 0, 0)),
            pl.BlockSpec(scale.shape, lambda b: (0, 0, 0)),
            pl.BlockSpec(shift.shape, lambda b: (0, 0, 0)),
        ],
        out_specs=(pl.BlockSpec((C1_p, NL), lambda b: (0, b)),
                   pl.BlockSpec((C1_p, NL), lambda b: (0, b)),
                   pl.BlockSpec((1, C1_p, Nb), lambda b: (b, 0, 0))),
        compiler_params=pltpu.CompilerParams(
            dimension_semantics=("parallel",),
            vmem_limit_bytes=32 * 1024 * 1024),               # fits v7x 64 MiB budget too
    )(x_buf, mask, w1, b1, wblk, scale, shift)

    # Cheap NCHW extraction (single fused slice+transpose copy in XLA).
    def unbuf(buf):
        gbuf = buf.reshape(C1_p, Npad, LB)[:C1, :N, :Lgrid].reshape(C1, N, H + 2, Wp)
        return jnp.transpose(gbuf[:, :, 1:H + 1, 1:W + 1], (1, 0, 2, 3))

    out1 = unbuf(out1_buf)
    out2 = unbuf(out2_buf)
    out3 = jnp.transpose(out3_buf, (0, 2, 1)).reshape(Npad, C1_p)[:N, :C1]   # (N, C)

    # Tiny classifier MLP on (N, C): negligible work, plain XLA.
    h = _leaky_relu(out3 @ params["fc1_w"].astype(f32) + params["fc1_b"].astype(f32))
    out4 = h @ params["fc2_w"].astype(f32) + params["fc2_b"].astype(f32)
    return out1, out2, out3, out4


# --------------------------- deterministic params ---------------------------

def init_params(key, in_channels, out_channels, num_conv, num_classes):
    keys = jax.random.split(key, 4 + num_conv)
    params = {
        # NOTE: conv weights are (kh, kw, Cin, Cout); a PyTorch (Cout,Cin,3,3)
        # tensor must be transposed (not reshaped) into this layout.
        "conv1_w": 0.1 * jax.random.normal(keys[0], (3, 3, in_channels, out_channels), jnp.float32),
        "conv1_b": 0.1 * jax.random.normal(keys[1], (out_channels,), jnp.float32),
        "fc1_w": 0.1 * jax.random.normal(keys[2], (out_channels, 30), jnp.float32),
        "fc1_b": jnp.zeros((30,), jnp.float32),
        "fc2_w": 0.1 * jax.random.normal(keys[3], (30, num_classes), jnp.float32),
        "fc2_b": jnp.zeros((num_classes,), jnp.float32),
        "blocks": [],
    }
    for i in range(num_conv):
        params["blocks"].append({
            "w": 0.1 * jax.random.normal(keys[4 + i], (3, 3, out_channels, out_channels), jnp.float32),
            "gamma": jnp.ones((out_channels,), jnp.float32),
            "beta": jnp.zeros((out_channels,), jnp.float32),
            "mean": jnp.zeros((out_channels,), jnp.float32),   # BN running_mean init
            "var": jnp.ones((out_channels,), jnp.float32),     # BN running_var init
        })
    return params


if __name__ == "__main__":
    B, Cin, H, W = 2, 4, 16, 16
    Cout, num_conv, num_classes = 8, 2, 10

    key = jax.random.PRNGKey(0)
    kx, kp = jax.random.split(key)
    x = jax.random.normal(kx, (B, Cin, H, W), jnp.float32)
    params = init_params(kp, Cin, Cout, num_conv, num_classes)

    out1, out2, out3, out4 = teacher_forward(x, params)
    jax.block_until_ready((out1, out2, out3, out4))

    assert out1.shape == (B, Cout, H, W)
    assert out2.shape == (B, Cout, H, W)
    assert out3.shape == (B, Cout)
    assert out4.shape == (B, num_classes)
    assert bool(jnp.all(jnp.isfinite(out1))) and bool(jnp.all(jnp.isfinite(out2)))
    assert bool(jnp.all(jnp.isfinite(out3))) and bool(jnp.all(jnp.isfinite(out4)))
    print("KERNEL_OK")
</pallas_src>

<mosaic_0001>
module attributes {stable_mosaic.version = 11 : i64} {
  func.func @teacher_kernel(%arg0: i32, %arg1: memref<8x768xbf16, #tpu.memory_space<vmem>>, %arg2: memref<1x768xf32, #tpu.memory_space<vmem>>, %arg3: memref<8x72xbf16, #tpu.memory_space<vmem>>, %arg4: memref<8x1xf32, #tpu.memory_space<vmem>>, %arg5: memref<2x8x72xbf16, #tpu.memory_space<vmem>>, %arg6: memref<2x8x1xf32, #tpu.memory_space<vmem>>, %arg7: memref<2x8x1xf32, #tpu.memory_space<vmem>>, %arg8: memref<8x768xf32, #tpu.memory_space<vmem>>, %arg9: memref<8x768xf32, #tpu.memory_space<vmem>>, %arg10: memref<1x8x2xf32, #tpu.memory_space<vmem>>) attributes {dimension_semantics = [#tpu.dimension_semantics<parallel>], iteration_bounds = array<i64: 1>, scalar_prefetch = 0 : i64, scratch_operands = 0 : i64, tpu.core_type = #tpu.core_type<tc>, window_params = [{transform_indices = @transform_0, window_bounds = array<i64: 8, 768>}, {pipeline_mode = #tpu.pipeline_mode<synchronous>, transform_indices = @transform_1, window_bounds = array<i64: 1, 768>}, {pipeline_mode = #tpu.pipeline_mode<synchronous>, transform_indices = @transform_2, window_bounds = array<i64: 8, 72>}, {pipeline_mode = #tpu.pipeline_mode<synchronous>, transform_indices = @transform_3, window_bounds = array<i64: 8, 1>}, {pipeline_mode = #tpu.pipeline_mode<synchronous>, transform_indices = @transform_4, window_bounds = array<i64: 2, 8, 72>}, {pipeline_mode = #tpu.pipeline_mode<synchronous>, transform_indices = @transform_5, window_bounds = array<i64: 2, 8, 1>}, {pipeline_mode = #tpu.pipeline_mode<synchronous>, transform_indices = @transform_6, window_bounds = array<i64: 2, 8, 1>}, {transform_indices = @transform_7, window_bounds = array<i64: 8, 768>}, {transform_indices = @transform_8, window_bounds = array<i64: 8, 768>}, {transform_indices = @transform_9, window_bounds = array<i64: 1, 8, 2>}]} {
    %c0 = arith.constant 0 : index
    %c0_0 = arith.constant 0 : index
    %0 = vector.load %arg2[%c0, %c0_0] : memref<1x768xf32, #tpu.memory_space<vmem>>, vector<1x768xf32>
    %c0_1 = arith.constant 0 : index
    %c0_2 = arith.constant 0 : index
    %1 = vector.load %arg1[%c0_1, %c0_2] : memref<8x768xbf16, #tpu.memory_space<vmem>>, vector<8x768xbf16>
    %2 = arith.extf %1 : vector<8x768xbf16> to vector<8x768xf32>
    %c0_3 = arith.constant 0 : index
    %c0_4 = arith.constant 0 : index
    %3 = vector.load %arg3[%c0_3, %c0_4] : memref<8x72xbf16, #tpu.memory_space<vmem>>, vector<8x72xbf16>
    %c19_i32 = arith.constant 19 : i32
    %4 = tpu.dynamic_rotate %2 by %c19_i32 dim 1 : vector<8x768xf32>, i32 -> vector<8x768xf32>
    %c18_i32 = arith.constant 18 : i32
    %5 = tpu.dynamic_rotate %2 by %c18_i32 dim 1 : vector<8x768xf32>, i32 -> vector<8x768xf32>
    %c17_i32 = arith.constant 17 : i32
    %6 = tpu.dynamic_rotate %2 by %c17_i32 dim 1 : vector<8x768xf32>, i32 -> vector<8x768xf32>
    %c1_i32 = arith.constant 1 : i32
    %7 = tpu.dynamic_rotate %2 by %c1_i32 dim 1 : vector<8x768xf32>, i32 -> vector<8x768xf32>
    %c767_i32 = arith.constant 767 : i32
    %8 = tpu.dynamic_rotate %2 by %c767_i32 dim 1 : vector<8x768xf32>, i32 -> vector<8x768xf32>
    %c751_i32 = arith.constant 751 : i32
    %9 = tpu.dynamic_rotate %2 by %c751_i32 dim 1 : vector<8x768xf32>, i32 -> vector<8x768xf32>
    %c750_i32 = arith.constant 750 : i32
    %10 = tpu.dynamic_rotate %2 by %c750_i32 dim 1 : vector<8x768xf32>, i32 -> vector<8x768xf32>
    %c749_i32 = arith.constant 749 : i32
    %11 = tpu.dynamic_rotate %2 by %c749_i32 dim 1 : vector<8x768xf32>, i32 -> vector<8x768xf32>
    %12 = tpu.concatenate %4, %5, %6, %7, %2, %8, %9, %10, %11 in 0 : vector<8x768xf32>, vector<8x768xf32>, vector<8x768xf32>, vector<8x768xf32>, vector<8x768xf32>, vector<8x768xf32>, vector<8x768xf32>, vector<8x768xf32>, vector<8x768xf32> -> vector<72x768xf32>
    %13 = arith.truncf %12 : vector<72x768xf32> to vector<72x768xbf16>
    %cst = arith.constant dense<0.000000e+00> : vector<8x768xf32>
    %14 = tpu.matmul %3, %13, %cst {dimension_numbers = #tpu.dot_dimension_numbers<[1], [0], [0], [1], [0, 0, 1, 1], [], []>} : vector<8x72xbf16>, vector<72x768xbf16>, vector<8x768xf32> -> vector<8x768xf32>
    %c0_5 = arith.constant 0 : index
    %c0_6 = arith.constant 0 : index
    %15 = vector.load %arg4[%c0_5, %c0_6] : memref<8x1xf32, #tpu.memory_space<vmem>>, vector<8x1xf32>
    %16 = vector.broadcast %15 : vector<8x1xf32> to vector<8x768xf32>
    %17 = arith.addf %14, %16 : vector<8x768xf32>
    %cst_7 = arith.constant 0.000000e+00 : f32
    %18 = vector.broadcast %cst_7 : f32 to vector<8x768xf32>
    %19 = arith.cmpf oge, %17, %18 : vector<8x768xf32>
    %cst_8 = arith.constant 0.00999999977 : f32
    %20 = vector.broadcast %cst_8 : f32 to vector<8x768xf32>
    %21 = arith.mulf %20, %17 : vector<8x768xf32>
    %22 = arith.select %19, %17, %21 : vector<8x768xi1>, vector<8x768xf32>
    %23 = vector.broadcast %0 : vector<1x768xf32> to vector<8x768xf32>
    %24 = arith.mulf %22, %23 : vector<8x768xf32>
    %c0_9 = arith.constant 0 : index
    %c0_10 = arith.constant 0 : index
    %25 = vector.load %arg8[%c0_9, %c0_10] : memref<8x768xf32, #tpu.memory_space<vmem>>, vector<8x768xf32>
    tpu.vector_store %arg8[%c0_9, %c0_10], %24 {strides = array<i32>} : memref<8x768xf32, #tpu.memory_space<vmem>>, vector<8x768xf32>,
    %c0_11 = arith.constant 0 : index
    %c0_12 = arith.constant 0 : index
    %c0_13 = arith.constant 0 : index
    %26 = vector.load %arg5[%c0_11, %c0_12, %c0_13] : memref<2x8x72xbf16, #tpu.memory_space<vmem>>, vector<1x8x72xbf16>
    %27 = vector.shape_cast %26 : vector<1x8x72xbf16> to vector<8x72xbf16>
    %c19_i32_14 = arith.constant 19 : i32
    %28 = tpu.dynamic_rotate %24 by %c19_i32_14 dim 1 : vector<8x768xf32>, i32 -> vector<8x768xf32>
    %c18_i32_15 = arith.constant 18 : i32
    %29 = tpu.dynamic_rotate %24 by %c18_i32_15 dim 1 : vector<8x768xf32>, i32 -> vector<8x768xf32>
    %c17_i32_16 = arith.constant 17 : i32
    %30 = tpu.dynamic_rotate %24 by %c17_i32_16 dim 1 : vector<8x768xf32>, i32 -> vector<8x768xf32>
    %c1_i32_17 = arith.constant 1 : i32
    %31 = tpu.dynamic_rotate %24 by %c1_i32_17 dim 1 : vector<8x768xf32>, i32 -> vector<8x768xf32>
    %c767_i32_18 = arith.constant 767 : i32
    %32 = tpu.dynamic_rotate %24 by %c767_i32_18 dim 1 : vector<8x768xf32>, i32 -> vector<8x768xf32>
    %c751_i32_19 = arith.constant 751 : i32
    %33 = tpu.dynamic_rotate %24 by %c751_i32_19 dim 1 : vector<8x768xf32>, i32 -> vector<8x768xf32>
    %c750_i32_20 = arith.constant 750 : i32
    %34 = tpu.dynamic_rotate %24 by %c750_i32_20 dim 1 : vector<8x768xf32>, i32 -> vector<8x768xf32>
    %c749_i32_21 = arith.constant 749 : i32
    %35 = tpu.dynamic_rotate %24 by %c749_i32_21 dim 1 : vector<8x768xf32>, i32 -> vector<8x768xf32>
    %36 = tpu.concatenate %28, %29, %30, %31, %24, %32, %33, %34, %35 in 0 : vector<8x768xf32>, vector<8x768xf32>, vector<8x768xf32>, vector<8x768xf32>, vector<8x768xf32>, vector<8x768xf32>, vector<8x768xf32>, vector<8x768xf32>, vector<8x768xf32> -> vector<72x768xf32>
    %37 = arith.truncf %36 : vector<72x768xf32> to vector<72x768xbf16>
    %cst_22 = arith.constant dense<0.000000e+00> : vector<8x768xf32>
    %38 = tpu.matmul %27, %37, %cst_22 {dimension_numbers = #tpu.dot_dimension_numbers<[1], [0], [0], [1], [0, 0, 1, 1], [], []>} : vector<8x72xbf16>, vector<72x768xbf16>, vector<8x768xf32> -> vector<8x768xf32>
    %cst_23 = arith.constant 0.000000e+00 : f32
    %39 = vector.broadcast %cst_23 : f32 to vector<8x768xf32>
    %40 = arith.cmpf oge, %38, %39 : vector<8x768xf32>
    %cst_24 = arith.constant 0.00999999977 : f32
    %41 = vector.broadcast %cst_24 : f32 to vector<8x768xf32>
    %42 = arith.mulf %41, %38 : vector<8x768xf32>
    %43 = arith.select %40, %38, %42 : vector<8x768xi1>, vector<8x768xf32>
    %c0_25 = arith.constant 0 : index
    %c0_26 = arith.constant 0 : index
    %c0_27 = arith.constant 0 : index
    %44 = vector.load %arg6[%c0_25, %c0_26, %c0_27] : memref<2x8x1xf32, #tpu.memory_space<vmem>>, vector<1x8x1xf32>
    %45 = vector.shape_cast %44 : vector<1x8x1xf32> to vector<8x1xf32>
    %46 = vector.broadcast %45 : vector<8x1xf32> to vector<8x768xf32>
    %47 = arith.mulf %43, %46 : vector<8x768xf32>
    %c0_28 = arith.constant 0 : index
    %c0_29 = arith.constant 0 : index
    %c0_30 = arith.constant 0 : index
    %48 = vector.load %arg7[%c0_28, %c0_29, %c0_30] : memref<2x8x1xf32, #tpu.memory_space<vmem>>, vector<1x8x1xf32>
    %49 = vector.shape_cast %48 : vector<1x8x1xf32> to vector<8x1xf32>
    %50 = vector.broadcast %49 : vector<8x1xf32> to vector<8x768xf32>
    %51 = arith.addf %47, %50 : vector<8x768xf32>
    %52 = vector.broadcast %0 : vector<1x768xf32> to vector<8x768xf32>
    %53 = arith.mulf %51, %52 : vector<8x768xf32>
    %c1 = arith.constant 1 : index
    %c0_31 = arith.constant 0 : index
    %c0_32 = arith.constant 0 : index
    %54 = vector.load %arg5[%c1, %c0_31, %c0_32] : memref<2x8x72xbf16, #tpu.memory_space<vmem>>, vector<1x8x72xbf16>
    %55 = vector.shape_cast %54 : vector<1x8x72xbf16> to vector<8x72xbf16>
    %c19_i32_33 = arith.constant 19 : i32
    %56 = tpu.dynamic_rotate %53 by %c19_i32_33 dim 1 : vector<8x768xf32>, i32 -> vector<8x768xf32>
    %c18_i32_34 = arith.constant 18 : i32
    %57 = tpu.dynamic_rotate %53 by %c18_i32_34 dim 1 : vector<8x768xf32>, i32 -> vector<8x768xf32>
    %c17_i32_35 = arith.constant 17 : i32
    %58 = tpu.dynamic_rotate %53 by %c17_i32_35 dim 1 : vector<8x768xf32>, i32 -> vector<8x768xf32>
    %c1_i32_36 = arith.constant 1 : i32
    %59 = tpu.dynamic_rotate %53 by %c1_i32_36 dim 1 : vector<8x768xf32>, i32 -> vector<8x768xf32>
    %c767_i32_37 = arith.constant 767 : i32
    %60 = tpu.dynamic_rotate %53 by %c767_i32_37 dim 1 : vector<8x768xf32>, i32 -> vector<8x768xf32>
    %c751_i32_38 = arith.constant 751 : i32
    %61 = tpu.dynamic_rotate %53 by %c751_i32_38 dim 1 : vector<8x768xf32>, i32 -> vector<8x768xf32>
    %c750_i32_39 = arith.constant 750 : i32
    %62 = tpu.dynamic_rotate %53 by %c750_i32_39 dim 1 : vector<8x768xf32>, i32 -> vector<8x768xf32>
    %c749_i32_40 = arith.constant 749 : i32
    %63 = tpu.dynamic_rotate %53 by %c749_i32_40 dim 1 : vector<8x768xf32>, i32 -> vector<8x768xf32>
    %64 = tpu.concatenate %56, %57, %58, %59, %53, %60, %61, %62, %63 in 0 : vector<8x768xf32>, vector<8x768xf32>, vector<8x768xf32>, vector<8x768xf32>, vector<8x768xf32>, vector<8x768xf32>, vector<8x768xf32>, vector<8x768xf32>, vector<8x768xf32> -> vector<72x768xf32>
    %65 = arith.truncf %64 : vector<72x768xf32> to vector<72x768xbf16>
    %cst_41 = arith.constant dense<0.000000e+00> : vector<8x768xf32>
    %66 = tpu.matmul %55, %65, %cst_41 {dimension_numbers = #tpu.dot_dimension_numbers<[1], [0], [0], [1], [0, 0, 1, 1], [], []>} : vector<8x72xbf16>, vector<72x768xbf16>, vector<8x768xf32> -> vector<8x768xf32>
    %cst_42 = arith.constant 0.000000e+00 : f32
    %67 = vector.broadcast %cst_42 : f32 to vector<8x768xf32>
    %68 = arith.cmpf oge, %66, %67 : vector<8x768xf32>
    %cst_43 = arith.constant 0.00999999977 : f32
    %69 = vector.broadcast %cst_43 : f32 to vector<8x768xf32>
    %70 = arith.mulf %69, %66 : vector<8x768xf32>
    %71 = arith.select %68, %66, %70 : vector<8x768xi1>, vector<8x768xf32>
    %c1_44 = arith.constant 1 : index
    %c0_45 = arith.constant 0 : index
    %c0_46 = arith.constant 0 : index
    %72 = vector.load %arg6[%c1_44, %c0_45, %c0_46] : memref<2x8x1xf32, #tpu.memory_space<vmem>>, vector<1x8x1xf32>
    %73 = vector.shape_cast %72 : vector<1x8x1xf32> to vector<8x1xf32>
    %74 = vector.broadcast %73 : vector<8x1xf32> to vector<8x768xf32>
    %75 = arith.mulf %71, %74 : vector<8x768xf32>
    %c1_47 = arith.constant 1 : index
    %c0_48 = arith.constant 0 : index
    %c0_49 = arith.constant 0 : index
    %76 = vector.load %arg7[%c1_47, %c0_48, %c0_49] : memref<2x8x1xf32, #tpu.memory_space<vmem>>, vector<1x8x1xf32>
    %77 = vector.shape_cast %76 : vector<1x8x1xf32> to vector<8x1xf32>
    %78 = vector.broadcast %77 : vector<8x1xf32> to vector<8x768xf32>
    %79 = arith.addf %75, %78 : vector<8x768xf32>
    %80 = vector.broadcast %0 : vector<1x768xf32> to vector<8x768xf32>
    %81 = arith.mulf %79, %80 : vector<8x768xf32>
    %c0_50 = arith.constant 0 : index
    %c0_51 = arith.constant 0 : index
    %82 = vector.load %arg9[%c0_50, %c0_51] : memref<8x768xf32, #tpu.memory_space<vmem>>, vector<8x768xf32>
    tpu.vector_store %arg9[%c0_50, %c0_51], %81 {strides = array<i32>} : memref<8x768xf32, #tpu.memory_space<vmem>>, vector<8x768xf32>,
    %83 = tpu.iota {dimensions = array<i32: 1>} : vector<1x2xi32>
    %cst_52 = arith.constant 0.000000e+00 : f32
    %84 = vector.broadcast %cst_52 : f32 to vector<8x2xf32>
    %85 = vector.extract_strided_slice %81 {offsets = [0, 0], sizes = [8, 384], strides = [1, 1]} : vector<8x768xf32> to vector<8x384xf32>
    %cst_53 = arith.constant dense<0.000000e+00> : vector<8xf32>
    %86 = vector.multi_reduction <add>, %85, %cst_53 [1] : vector<8x384xf32> to vector<8xf32>
    %87 = vector.shape_cast %86 : vector<8xf32> to vector<8x1xf32>
    %c0_i32 = arith.constant 0 : i32
    %88 = vector.broadcast %c0_i32 : i32 to vector<1x2xi32>
    %89 = arith.cmpi eq, %83, %88 : vector<1x2xi32>
    %90 = arith.extui %89 : vector<1x2xi1> to vector<1x2xi32>
    %91 = arith.sitofp %90 : vector<1x2xi32> to vector<1x2xf32>
    %92 = vector.broadcast %87 : vector<8x1xf32> to vector<8x2xf32>
    %93 = vector.broadcast %91 : vector<1x2xf32> to vector<8x2xf32>
    %94 = arith.mulf %92, %93 : vector<8x2xf32>
    %95 = arith.addf %84, %94 : vector<8x2xf32>
    %96 = vector.extract_strided_slice %81 {offsets = [0, 384], sizes = [8, 384], strides = [1, 1]} : vector<8x768xf32> to vector<8x384xf32>
    %cst_54 = arith.constant dense<0.000000e+00> : vector<8xf32>
    %97 = vector.multi_reduction <add>, %96, %cst_54 [1] : vector<8x384xf32> to vector<8xf32>
    %98 = vector.shape_cast %97 : vector<8xf32> to vector<8x1xf32>
    %c1_i32_55 = arith.constant 1 : i32
    %99 = vector.broadcast %c1_i32_55 : i32 to vector<1x2xi32>
    %100 = arith.cmpi eq, %83, %99 : vector<1x2xi32>
    %101 = arith.extui %100 : vector<1x2xi1> to vector<1x2xi32>
    %102 = arith.sitofp %101 : vector<1x2xi32> to vector<1x2xf32>
    %103 = vector.broadcast %98 : vector<8x1xf32> to vector<8x2xf32>
    %104 = vector.broadcast %102 : vector<1x2xf32> to vector<8x2xf32>
    %105 = arith.mulf %103, %104 : vector<8x2xf32>
    %106 = arith.addf %95, %105 : vector<8x2xf32>
    %cst_56 = arith.constant 3.906250e-03 : f32
    %107 = vector.broadcast %cst_56 : f32 to vector<8x2xf32>
    %108 = arith.mulf %106, %107 : vector<8x2xf32>
    %c0_57 = arith.constant 0 : index
    %c0_58 = arith.constant 0 : index
    %c0_59 = arith.constant 0 : index
    %109 = vector.load %arg10[%c0_57, %c0_58, %c0_59] : memref<1x8x2xf32, #tpu.memory_space<vmem>>, vector<1x8x2xf32>
    %110 = vector.shape_cast %109 : vector<1x8x2xf32> to vector<8x2xf32>
    %111 = vector.shape_cast %108 : vector<8x2xf32> to vector<1x8x2xf32>
    tpu.vector_store %arg10[%c0_57, %c0_58, %c0_59], %111 {strides = array<i32>} : memref<1x8x2xf32, #tpu.memory_space<vmem>>, vector<1x8x2xf32>,
    return
  }
  func.func @transform_0(%arg0: i32) -> (i32, i32) {
    %c0_i32 = arith.constant 0 : i32
    %c0_i32_0 = arith.constant 0 : i32
    return %c0_i32, %arg0 : i32, i32
  }
  func.func @transform_1(%arg0: i32) -> (i32, i32) {
    %c0_i32 = arith.constant 0 : i32
    %c0_i32_0 = arith.constant 0 : i32
    %c0_i32_1 = arith.constant 0 : i32
    return %c0_i32, %c0_i32_0 : i32, i32
  }
  func.func @transform_2(%arg0: i32) -> (i32, i32) {
    %c0_i32 = arith.constant 0 : i32
    %c0_i32_0 = arith.constant 0 : i32
    %c0_i32_1 = arith.constant 0 : i32
    return %c0_i32, %c0_i32_0 : i32, i32
  }
  func.func @transform_3(%arg0: i32) -> (i32, i32) {
    %c0_i32 = arith.constant 0 : i32
    %c0_i32_0 = arith.constant 0 : i32
    %c0_i32_1 = arith.constant 0 : i32
    return %c0_i32, %c0_i32_0 : i32, i32
  }
  func.func @transform_4(%arg0: i32) -> (i32, i32, i32) {
    %c0_i32 = arith.constant 0 : i32
    %c0_i32_0 = arith.constant 0 : i32
    %c0_i32_1 = arith.constant 0 : i32
    %c0_i32_2 = arith.constant 0 : i32
    return %c0_i32, %c0_i32_0, %c0_i32_1 : i32, i32, i32
  }
  func.func @transform_5(%arg0: i32) -> (i32, i32, i32) {
    %c0_i32 = arith.constant 0 : i32
    %c0_i32_0 = arith.constant 0 : i32
    %c0_i32_1 = arith.constant 0 : i32
    %c0_i32_2 = arith.constant 0 : i32
    return %c0_i32, %c0_i32_0, %c0_i32_1 : i32, i32, i32
  }
  func.func @transform_6(%arg0: i32) -> (i32, i32, i32) {
    %c0_i32 = arith.constant 0 : i32
    %c0_i32_0 = arith.constant 0 : i32
    %c0_i32_1 = arith.constant 0 : i32
    %c0_i32_2 = arith.constant 0 : i32
    return %c0_i32, %c0_i32_0, %c0_i32_1 : i32, i32, i32
  }
  func.func @transform_7(%arg0: i32) -> (i32, i32) {
    %c0_i32 = arith.constant 0 : i32
    %c0_i32_0 = arith.constant 0 : i32
    return %c0_i32, %arg0 : i32, i32
  }
  func.func @transform_8(%arg0: i32) -> (i32, i32) {
    %c0_i32 = arith.constant 0 : i32
    %c0_i32_0 = arith.constant 0 : i32
    return %c0_i32, %arg0 : i32, i32
  }
  func.func @transform_9(%arg0: i32) -> (i32, i32, i32) {
    %c0_i32 = arith.constant 0 : i32
    %c0_i32_0 = arith.constant 0 : i32
    %c0_i32_1 = arith.constant 0 : i32
    return %arg0, %c0_i32, %c0_i32_0 : i32, i32, i32
  }
}

</mosaic_0001>

<llo_original>
// kernel: tpu_custom_call.1
$region0: #{tpu_custom_call.1}
  #allocation0 [shape = 'u32[]', space=smem, size = 0x4, offset = 0x4, fixed_abs, tag = 'smem constant byte address 0x4 - core index']
  #allocation1 [shape = 'u32[144,128]{1,0:T(1,128)}', space=vmem, size = 0x12000, scoped, tag = 'internal scratch']
  %s0 = inlined_call_operand.vmem [shape: bf16[8,768], index: 0, kind: input, shape index: {}]
  %s1 = inlined_call_operand.vmem [shape: f32[1,768], index: 1, kind: input, shape index: {}]
  %s2 = inlined_call_operand.vmem [shape: bf16[8,72], index: 2, kind: input, shape index: {}]
  %s3 = inlined_call_operand.vmem [shape: f32[8,1], index: 3, kind: input, shape index: {}]
  %s4 = inlined_call_operand.vmem [shape: bf16[2,8,72], index: 4, kind: input, shape index: {}]
  %s5 = inlined_call_operand.vmem [shape: f32[2,8,1], index: 5, kind: input, shape index: {}]
  %s6 = inlined_call_operand.vmem [shape: f32[2,8,1], index: 6, kind: input, shape index: {}]
  %s7 = inlined_call_operand.hbm [shape: f32[8,768], index: 7, kind: output, shape index: {0}]
  %s8 = inlined_call_operand.hbm [shape: f32[8,768], index: 8, kind: output, shape index: {1}]
  %s9 = inlined_call_operand.vmem [shape: f32[1,8,2], index: 9, kind: output, shape index: {2}]
  %10 = xla_tuple %s7, %s8, %s9
  %s11 = sld [smem:[#allocation0]]
  $region54: #{tpu_custom_call.1} parent=0
    _
  %s13 = ssub.s32 1, %s11
  %s14 = scalar_select 0, %s13, %s11
  $region1: #{tpu_custom_call.1} parent=0
    #allocation2 [shape = 'u8[24576]{0}', space=vmem, size = 0x6000, scoped, tag = 'output window, operand 0, single buffered']
    #allocation3 [shape = 's32[1]{0}', space=sflag, size = 0x4, scoped, tag = 'scoped memory for tpu_custom_call.1']
    #allocation4 [shape = 'u8[24576]{0}', space=vmem, size = 0x6000, scoped, tag = 'output window, operand 1, single buffered']
    #allocation5 [shape = 's32[1]{0}', space=sflag, size = 0x4, scoped, tag = 'scoped memory for tpu_custom_call.1']
    %15 = vsyncpa [#allocation3], 0
    %16 = vsyncpa [#allocation5], 0
    // Predicated region
    $region2: #{tpu_custom_call.1} parent=1 // pred_check
      _
    $region3: #{tpu_custom_call.1} parent=1 // pred_check_branch
      %18 = sbr.rel (0) target = $region5
    $region4: #{tpu_custom_call.1} parent=1 // pred_region
      _
    $region5: #{tpu_custom_call.1} parent=1 // pred_fallthru
      _
    // Predicated region
    $region6: #{tpu_custom_call.1} parent=1 // pred_check
      _
    $region7: #{tpu_custom_call.1} parent=1 // pred_check_branch
      %20 = sbr.rel (0) target = $region9
    $region8: #{tpu_custom_call.1} parent=1 // pred_region
      _
    $region9: #{tpu_custom_call.1} parent=1 // pred_fallthru
      _
    // Predicated region
    $region10: #{tpu_custom_call.1} parent=1 // pred_check
      _
    $region11: #{tpu_custom_call.1} parent=1 // pred_check_branch
      %22 = sbr.rel (0) target = $region13
    $region12: #{tpu_custom_call.1} parent=1 // pred_region
      _
    $region13: #{tpu_custom_call.1} parent=1 // pred_fallthru
      _
    // Predicated region
    $region14: #{tpu_custom_call.1} parent=1 // pred_check
      _
    $region15: #{tpu_custom_call.1} parent=1 // pred_check_branch
      %24 = sbr.rel (0) target = $region17
    $region16: #{tpu_custom_call.1} parent=1 // pred_region
      _
    $region17: #{tpu_custom_call.1} parent=1 // pred_fallthru
      _
    // Predicated region
    $region18: #{tpu_custom_call.1} parent=1 // pred_check
      _
    $region19: #{tpu_custom_call.1} parent=1 // pred_check_branch
      %26 = sbr.rel (0) target = $region21
    $region20: #{tpu_custom_call.1} parent=1 // pred_region
      _
    $region21: #{tpu_custom_call.1} parent=1 // pred_fallthru
      _
    // Predicated region
    $region22: #{tpu_custom_call.1} parent=1 // pred_check
      _
    $region23: #{tpu_custom_call.1} parent=1 // pred_check_branch
      %28 = sbr.rel (0) target = $region25
    $region24: #{tpu_custom_call.1} parent=1 // pred_region
      _
    $region25: #{tpu_custom_call.1} parent=1 // pred_fallthru
      _
    // Predicated region
    $region26: #{tpu_custom_call.1} parent=1 // pred_check
      _
    $region27: #{tpu_custom_call.1} parent=1 // pred_check_branch
      %30 = sbr.rel (0) target = $region29
    $region28: #{tpu_custom_call.1} parent=1 // pred_region
      _
    $region29: #{tpu_custom_call.1} parent=1 // pred_fallthru
      _
    %v32 = vld [vmem:[%s1] sm:$0x3f]
    %v33 = vld [vmem:[%s0] sm:$0xff]
    %v34 = vld [vmem:[%s0 + $0x8] sm:$0xff]
    %v35 = vld [vmem:[%s0 + $0x10] sm:$0xff]
    %v36 = vunpack.c.l.bf16 %v33
    %v37 = vunpack.c.h.bf16 %v33
    %v38 = vunpack.c.l.bf16 %v34
    %v39 = vunpack.c.h.bf16 %v34
    %v40 = vunpack.c.l.bf16 %v35
    %v41 = vunpack.c.h.bf16 %v35
    %v42 = vld [vmem:[%s2] sm:$0xf]
    %43 = vrot.lane.b32.xlu0 %v36, 19
    %v44 = vpop.permute.xlu0 %43
    %45 = vrot.lane.b32.xlu0 %v37, 19
    %v46 = vpop.permute.xlu0 %45
    %47 = vrot.lane.b32.xlu0 %v38, 19
    %v48 = vpop.permute.xlu0 %47
    %49 = vrot.lane.b32.xlu0 %v39, 19
    %v50 = vpop.permute.xlu0 %49
    %51 = vrot.lane.b32.xlu0 %v40, 19
    %v52 = vpop.permute.xlu0 %51
    %53 = vrot.lane.b32.xlu0 %v41, 19
    %v54 = vpop.permute.xlu0 %53
    %v55 = vlaneseq
    %v56 = vand.u32 %v55, 127
    %vm57 = vcmp.lt.s32.totalorder %v56, 19
    %v58 = vsel %vm57, %v52, %v54
    %v59 = vsel %vm57, %v50, %v52
    %v60 = vsel %vm57, %v48, %v50
    %v61 = vsel %vm57, %v46, %v48
    %v62 = vsel %vm57, %v44, %v46
    %v63 = vsel %vm57, %v54, %v44
    %64 = vrot.lane.b32.xlu0 %v36, 18
    %v65 = vpop.permute.xlu0 %64
    %66 = vrot.lane.b32.xlu0 %v37, 18
    %v67 = vpop.permute.xlu0 %66
    %68 = vrot.lane.b32.xlu0 %v38, 18
    %v69 = vpop.permute.xlu0 %68
    %70 = vrot.lane.b32.xlu0 %v39, 18
    %v71 = vpop.permute.xlu0 %70
    %72 = vrot.lane.b32.xlu0 %v40, 18
    %v73 = vpop.permute.xlu0 %72
    %74 = vrot.lane.b32.xlu0 %v41, 18
    %v75 = vpop.permute.xlu0 %74
    %vm76 = vcmp.lt.s32.totalorder %v56, 18
    %v77 = vsel %vm76, %v73, %v75
    %v78 = vsel %vm76, %v71, %v73
    %v79 = vsel %vm76, %v69, %v71
    %v80 = vsel %vm76, %v67, %v69
    %v81 = vsel %vm76, %v65, %v67
    %v82 = vsel %vm76, %v75, %v65
    %83 = vrot.lane.b32.xlu0 %v36, 17
    %v84 = vpop.permute.xlu0 %83
    %85 = vrot.lane.b32.xlu0 %v37, 17
    %v86 = vpop.permute.xlu0 %85
    %87 = vrot.lane.b32.xlu0 %v38, 17
    %v88 = vpop.permute.xlu0 %87
    %89 = vrot.lane.b32.xlu0 %v39, 17
    %v90 = vpop.permute.xlu0 %89
    %91 = vrot.lane.b32.xlu0 %v40, 17
    %v92 = vpop.permute.xlu0 %91
    %93 = vrot.lane.b32.xlu0 %v41, 17
    %v94 = vpop.permute.xlu0 %93
    %vm95 = vcmp.lt.s32.totalorder %v56, 17
    %v96 = vsel %vm95, %v92, %v94
    %v97 = vsel %vm95, %v90, %v92
    %v98 = vsel %vm95, %v88, %v90
    %v99 = vsel %vm95, %v86, %v88
    %v100 = vsel %vm95, %v84, %v86
    %v101 = vsel %vm95, %v94, %v84
    %102 = vrot.lane.b32.xlu0 %v36, 1
    %v103 = vpop.permute.xlu0 %102
    %104 = vrot.lane.b32.xlu0 %v37, 1
    %v105 = vpop.permute.xlu0 %104
    %106 = vrot.lane.b32.xlu0 %v38, 1
    %v107 = vpop.permute.xlu0 %106
    %108 = vrot.lane.b32.xlu0 %v39, 1
    %v109 = vpop.permute.xlu0 %108
    %110 = vrot.lane.b32.xlu0 %v40, 1
    %v111 = vpop.permute.xlu0 %110
    %112 = vrot.lane.b32.xlu0 %v41, 1
    %v113 = vpop.permute.xlu0 %112
    %vm114 = vcmp.lt.s32.totalorder %v56, 1
    %v115 = vsel %vm114, %v111, %v113
    %v116 = vsel %vm114, %v109, %v111
    %v117 = vsel %vm114, %v107, %v109
    %v118 = vsel %vm114, %v105, %v107
    %v119 = vsel %vm114, %v103, %v105
    %v120 = vsel %vm114, %v113, %v103
    %121 = vrot.lane.b32.xlu0 %v36, 127
    %v122 = vpop.permute.xlu0 %121
    %123 = vrot.lane.b32.xlu0 %v37, 127
    %v124 = vpop.permute.xlu0 %123
    %125 = vrot.lane.b32.xlu0 %v38, 127
    %v126 = vpop.permute.xlu0 %125
    %127 = vrot.lane.b32.xlu0 %v39, 127
    %v128 = vpop.permute.xlu0 %127
    %129 = vrot.lane.b32.xlu0 %v40, 127
    %v130 = vpop.permute.xlu0 %129
    %131 = vrot.lane.b32.xlu0 %v41, 127
    %v132 = vpop.permute.xlu0 %131
    %vm133 = vcmp.lt.s32.totalorder %v56, 127
    %v134 = vsel %vm133, %v130, %v132
    %v135 = vsel %vm133, %v128, %v130
    %v136 = vsel %vm133, %v126, %v128
    %v137 = vsel %vm133, %v124, %v126
    %v138 = vsel %vm133, %v122, %v124
    %v139 = vsel %vm133, %v132, %v122
    %140 = vrot.lane.b32.xlu0 %v36, 111
    %v141 = vpop.permute.xlu0 %140
    %142 = vrot.lane.b32.xlu0 %v37, 111
    %v143 = vpop.permute.xlu0 %142
    %144 = vrot.lane.b32.xlu0 %v38, 111
    %v145 = vpop.permute.xlu0 %144
    %146 = vrot.lane.b32.xlu0 %v39, 111
    %v147 = vpop.permute.xlu0 %146
    %148 = vrot.lane.b32.xlu0 %v40, 111
    %v149 = vpop.permute.xlu0 %148
    %150 = vrot.lane.b32.xlu0 %v41, 111
    %v151 = vpop.permute.xlu0 %150
    %vm152 = vcmp.lt.s32.totalorder %v56, 111
    %v153 = vsel %vm152, %v149, %v151
    %v154 = vsel %vm152, %v147, %v149
    %v155 = vsel %vm152, %v145, %v147
    %v156 = vsel %vm152, %v143, %v145
    %v157 = vsel %vm152, %v141, %v143
    %v158 = vsel %vm152, %v151, %v141
    %159 = vrot.lane.b32.xlu0 %v36, 110
    %v160 = vpop.permute.xlu0 %159
    %161 = vrot.lane.b32.xlu0 %v37, 110
    %v162 = vpop.permute.xlu0 %161
    %163 = vrot.lane.b32.xlu0 %v38, 110
    %v164 = vpop.permute.xlu0 %163
    %165 = vrot.lane.b32.xlu0 %v39, 110
    %v166 = vpop.permute.xlu0 %165
    %167 = vrot.lane.b32.xlu0 %v40, 110
    %v168 = vpop.permute.xlu0 %167
    %169 = vrot.lane.b32.xlu0 %v41, 110
    %v170 = vpop.permute.xlu0 %169
    %vm171 = vcmp.lt.s32.totalorder %v56, 110
    %v172 = vsel %vm171, %v168, %v170
    %v173 = vsel %vm171, %v166, %v168
    %v174 = vsel %vm171, %v164, %v166
    %v175 = vsel %vm171, %v162, %v164
    %v176 = vsel %vm171, %v160, %v162
    %v177 = vsel %vm171, %v170, %v160
    %178 = vrot.lane.b32.xlu0 %v36, 109
    %v179 = vpop.permute.xlu0 %178
    %180 = vrot.lane.b32.xlu0 %v37, 109
    %v181 = vpop.permute.xlu0 %180
    %182 = vrot.lane.b32.xlu0 %v38, 109
    %v183 = vpop.permute.xlu0 %182
    %184 = vrot.lane.b32.xlu0 %v39, 109
    %v185 = vpop.permute.xlu0 %184
    %186 = vrot.lane.b32.xlu0 %v40, 109
    %v187 = vpop.permute.xlu0 %186
    %188 = vrot.lane.b32.xlu0 %v41, 109
    %v189 = vpop.permute.xlu0 %188
    %vm190 = vcmp.lt.s32.totalorder %v56, 109
    %v191 = vsel %vm190, %v187, %v189
    %v192 = vsel %vm190, %v185, %v187
    %v193 = vsel %vm190, %v183, %v185
    %v194 = vsel %vm190, %v181, %v183
    %v195 = vsel %vm190, %v179, %v181
    %v196 = vsel %vm190, %v189, %v179
    %v197 = vpack.c.bf16 %v82, %v63
    %v198 = vpack.c.bf16 %v81, %v62
    %v199 = vpack.c.bf16 %v80, %v61
    %v200 = vpack.c.bf16 %v79, %v60
    %v201 = vpack.c.bf16 %v78, %v59
    %v202 = vpack.c.bf16 %v77, %v58
    %v203 = vpack.c.bf16 %v120, %v101
    %v204 = vpack.c.bf16 %v119, %v100
    %v205 = vpack.c.bf16 %v118, %v99
    %v206 = vpack.c.bf16 %v117, %v98
    %v207 = vpack.c.bf16 %v116, %v97
    %v208 = vpack.c.bf16 %v115, %v96
    %v209 = vpack.c.bf16 %v138, %v36
    %v210 = vpack.c.bf16 %v137, %v37
    %v211 = vpack.c.bf16 %v136, %v38
    %v212 = vpack.c.bf16 %v135, %v39
    %v213 = vpack.c.bf16 %v134, %v40
    %v214 = vpack.c.bf16 %v139, %v41
    %v215 = vpack.c.bf16 %v176, %v157
    %v216 = vpack.c.bf16 %v175, %v156
    %v217 = vpack.c.bf16 %v174, %v155
    %v218 = vpack.c.bf16 %v173, %v154
    %v219 = vpack.c.bf16 %v172, %v153
    %v220 = vpack.c.bf16 %v177, %v158
    %v221 = vpack.c.bf16 %v195, %v195
    %v222 = vpack.c.bf16 %v194, %v194
    %v223 = vpack.c.bf16 %v193, %v193
    %v224 = vpack.c.bf16 %v192, %v192
    %v225 = vpack.c.bf16 %v191, %v191
    %v226 = vpack.c.bf16 %v196, %v196
    %v227 = vld [vmem:[%s3] sm:$0xff]
    %229 = vset.pattern.permute.xlu0 0
    %230 = vperm.xlu0 %229, %v227
    %v231 = vpop.permute.xlu0 %230
    %vm233 = vcmask 588800
    %v235 = vsel %vm233, %v42, 0
    %vm237 = vcmask 1043456
    %v239 = vsel %vm237, %v221, 0
    %v242 = vsel %vm237, %v222, 0
    %v245 = vsel %vm237, %v223, 0
    %v248 = vsel %vm237, %v224, 0
    %v251 = vsel %vm237, %v225, 0
    %v254 = vsel %vm237, %v226, 0
    %256 = vmatprep.subr.bf16.mxu0 %v198
    %257 = vmatpush1.bf16.msra.mxu0 %v197
    %258 = vmatprep.subr.bf16.mxu0 %v204
    %259 = vmatpush1.bf16.msra.mxu0 %v203
    %260 = vmatprep.subr.bf16.mxu0 %v210
    %261 = vmatpush1.bf16.msra.mxu0 %v209
    %262 = vmatprep.subr.bf16.mxu0 %v216
    %263 = vmatpush1.bf16.msra.mxu0 %v215
    %264 = vmatprep.subr.bf16.mxu0 %v242
    %265 = vmatpush1.bf16.msra.mxu0 %v239
    %266 = vmatprep.subr.bf16.mxu0 0
    %267 = vmatpush1.bf16.msra.mxu0 0
    %268 = vmatprep.subr.bf16.mxu0 0
    %269 = vmatpush1.bf16.msra.mxu0 0
    %270 = vmatprep.subr.bf16.mxu0 0
    %271 = vmatpush1.bf16.msra.mxu0 0
    %272 = vmatprep.subr.bf16.mxu0 0
    %273 = vmatpush1.bf16.msra.mxu0 0
    %274 = vmatprep.subr.bf16.mxu0 0
    %275 = vmatpush1.bf16.msra.mxu0 0
    %276 = vmatprep.subr.bf16.mxu0 0
    %277 = vmatpush1.bf16.msra.mxu0 0
    %278 = vmatprep.subr.bf16.mxu0 0
    %279 = vmatpush1.bf16.msra.mxu0 0
    %280 = vmatprep.subr.bf16.mxu0 0
    %281 = vmatpush1.bf16.msra.mxu0 0
    %282 = vmatprep.subr.bf16.mxu0 0
    %283 = vmatpush1.bf16.msra.mxu0 0
    %284 = vmatprep.subr.bf16.mxu0 0
    %285 = vmatpush1.bf16.msra.mxu0 0
    %286 = vmatprep.subr.bf16.mxu0 0
    %287 = vmatpush1.bf16.msra.mxu0 0
    %288 = vmatprep.mubr.bf16.mxu0 0
    %289 = vmatmul.mubr.bf16.gmra.mrb[0].mxu0 %v235
    %v290 = vpop.f32.mrb[0].mxu0
    %v291 = vadd.f32 %v231, %v290
    %v292 = vpop.f32.mrb[0].mxu0
    %v293 = vadd.f32 %v231, %v292
    %v294 = vpop.f32.mrb[0].mxu0
    %v295 = vpop.f32.mrb[0].mxu0
    %296 = vdwg.mxu0
    %297 = vmatprep.subr.bf16.mxu0 %v200
    %298 = vmatpush1.bf16.msra.mxu0 %v199
    %299 = vmatprep.subr.bf16.mxu0 %v206
    %300 = vmatpush1.bf16.msra.mxu0 %v205
    %301 = vmatprep.subr.bf16.mxu0 %v212
    %302 = vmatpush1.bf16.msra.mxu0 %v211
    %303 = vmatprep.subr.bf16.mxu0 %v218
    %304 = vmatpush1.bf16.msra.mxu0 %v217
    %305 = vmatprep.subr.bf16.mxu0 %v248
    %306 = vmatpush1.bf16.msra.mxu0 %v245
    %307 = vmatprep.subr.bf16.mxu0 0
    %308 = vmatpush1.bf16.msra.mxu0 0
    %309 = vmatprep.subr.bf16.mxu0 0
    %310 = vmatpush1.bf16.msra.mxu0 0
    %311 = vmatprep.subr.bf16.mxu0 0
    %312 = vmatpush1.bf16.msra.mxu0 0
    %313 = vmatprep.subr.bf16.mxu0 0
    %314 = vmatpush1.bf16.msra.mxu0 0
    %315 = vmatprep.subr.bf16.mxu0 0
    %316 = vmatpush1.bf16.msra.mxu0 0
    %317 = vmatprep.subr.bf16.mxu0 0
    %318 = vmatpush1.bf16.msra.mxu0 0
    %319 = vmatprep.subr.bf16.mxu0 0
    %320 = vmatpush1.bf16.msra.mxu0 0
    %321 = vmatprep.subr.bf16.mxu0 0
    %322 = vmatpush1.bf16.msra.mxu0 0
    %323 = vmatprep.subr.bf16.mxu0 0
    %324 = vmatpush1.bf16.msra.mxu0 0
    %325 = vmatprep.subr.bf16.mxu0 0
    %326 = vmatpush1.bf16.msra.mxu0 0
    %327 = vmatprep.subr.bf16.mxu0 0
    %328 = vmatpush1.bf16.msra.mxu0 0
    %329 = vmatprep.mubr.bf16.mxu0 0
    %330 = vmatmul.mubr.bf16.gmra.mrb[0].mxu0 %v235
    %v331 = vpop.f32.mrb[0].mxu0
    %v332 = vadd.f32 %v231, %v331
    %v333 = vpop.f32.mrb[0].mxu0
    %v334 = vadd.f32 %v231, %v333
    %v335 = vpop.f32.mrb[0].mxu0
    %v336 = vpop.f32.mrb[0].mxu0
    %337 = vdwg.mxu0
    %338 = vmatprep.subr.bf16.mxu0 %v202
    %339 = vmatpush1.bf16.msra.mxu0 %v201
    %340 = vmatprep.subr.bf16.mxu0 %v208
    %341 = vmatpush1.bf16.msra.mxu0 %v207
    %342 = vmatprep.subr.bf16.mxu0 %v214
    %343 = vmatpush1.bf16.msra.mxu0 %v213
    %344 = vmatprep.subr.bf16.mxu0 %v220
    %345 = vmatpush1.bf16.msra.mxu0 %v219
    %346 = vmatprep.subr.bf16.mxu0 %v254
    %347 = vmatpush1.bf16.msra.mxu0 %v251
    %348 = vmatprep.subr.bf16.mxu0 0
    %349 = vmatpush1.bf16.msra.mxu0 0
    %350 = vmatprep.subr.bf16.mxu0 0
    %351 = vmatpush1.bf16.msra.mxu0 0
    %352 = vmatprep.subr.bf16.mxu0 0
    %353 = vmatpush1.bf16.msra.mxu0 0
    %354 = vmatprep.subr.bf16.mxu0 0
    %355 = vmatpush1.bf16.msra.mxu0 0
    %356 = vmatprep.subr.bf16.mxu0 0
    %357 = vmatpush1.bf16.msra.mxu0 0
    %358 = vmatprep.subr.bf16.mxu0 0
    %359 = vmatpush1.bf16.msra.mxu0 0
    %360 = vmatprep.subr.bf16.mxu0 0
    %361 = vmatpush1.bf16.msra.mxu0 0
    %362 = vmatprep.subr.bf16.mxu0 0
    %363 = vmatpush1.bf16.msra.mxu0 0
    %364 = vmatprep.subr.bf16.mxu0 0
    %365 = vmatpush1.bf16.msra.mxu0 0
    %366 = vmatprep.subr.bf16.mxu0 0
    %367 = vmatpush1.bf16.msra.mxu0 0
    %368 = vmatprep.subr.bf16.mxu0 0
    %369 = vmatpush1.bf16.msra.mxu0 0
    %370 = vmatprep.mubr.bf16.mxu0 0
    %371 = vmatmul.mubr.bf16.gmra.mrb[0].mxu0 %v235
    %v372 = vpop.f32.mrb[0].mxu0
    %v373 = vadd.f32 %v231, %v372
    %v374 = vpop.f32.mrb[0].mxu0
    %v375 = vadd.f32 %v231, %v374
    %v376 = vpop.f32.mrb[0].mxu0
    %v377 = vpop.f32.mrb[0].mxu0
    %378 = vdwg.mxu0
    %vm379 = vcmp.ge.f32.partialorder %v291, 0.0
    %vm380 = vcmp.ge.f32.partialorder %v293, 0.0
    %vm381 = vcmp.ge.f32.partialorder %v332, 0.0
    %vm382 = vcmp.ge.f32.partialorder %v334, 0.0
    %vm383 = vcmp.ge.f32.partialorder %v373, 0.0
    %vm384 = vcmp.ge.f32.partialorder %v375, 0.0
    %v385 = vmul.f32 %v291, 0.01
    %v386 = vmul.f32 %v293, 0.01
    %v387 = vmul.f32 %v332, 0.01
    %v388 = vmul.f32 %v334, 0.01
    %v389 = vmul.f32 %v373, 0.01
    %v390 = vmul.f32 %v375, 0.01
    %v391 = vsel %vm379, %v291, %v385
    %v392 = vsel %vm380, %v293, %v386
    %v393 = vsel %vm381, %v332, %v387
    %v394 = vsel %vm382, %v334, %v388
    %v395 = vsel %vm383, %v373, %v389
    %v396 = vsel %vm384, %v375, %v390
    %v398 = vlaneseq
    %v399 = vshrl.u32 %v398, 7
    %v400 = vsub.s32 0, %v399
    %v401 = vrot.slane %v32, %v400
    %v402 = vlaneseq
    %v403 = vshrl.u32 %v402, 7
    %v404 = vsub.s32 1, %v403
    %v405 = vrot.slane %v32, %v404
    %v406 = vlaneseq
    %v407 = vshrl.u32 %v406, 7
    %v408 = vsub.s32 2, %v407
    %v409 = vrot.slane %v32, %v408
    %v410 = vlaneseq
    %v411 = vshrl.u32 %v410, 7
    %v412 = vsub.s32 3, %v411
    %v413 = vrot.slane %v32, %v412
    %v414 = vlaneseq
    %v415 = vshrl.u32 %v414, 7
    %v416 = vsub.s32 4, %v415
    %v417 = vrot.slane %v32, %v416
    %v418 = vlaneseq
    %v419 = vshrl.u32 %v418, 7
    %v420 = vsub.s32 5, %v419
    %v421 = vrot.slane %v32, %v420
    %v428 = vmul.f32 %v391, %v401
    %v429 = vmul.f32 %v392, %v405
    %v430 = vmul.f32 %v393, %v409
    %v431 = vmul.f32 %v394, %v413
    %v432 = vmul.f32 %v395, %v417
    %v433 = vmul.f32 %v396, %v421
    %434 = vst [vmem:[#allocation2] sm:$0xff] %v428
    %435 = vst [vmem:[#allocation2 + $0x8] sm:$0xff] %v429
    %436 = vst [vmem:[#allocation2 + $0x10] sm:$0xff] %v430
    %437 = vst [vmem:[#allocation2 + $0x18] sm:$0xff] %v431
    %438 = vst [vmem:[#allocation2 + $0x20] sm:$0xff] %v432
    %439 = vst [vmem:[#allocation2 + $0x28] sm:$0xff] %v433
    %v440 = vld [vmem:[%s4] sm:$0xf]
    %441 = vrot.lane.b32.xlu0 %v428, 19
    %v442 = vpop.permute.xlu0 %441
    %443 = vrot.lane.b32.xlu0 %v429, 19
    %v444 = vpop.permute.xlu0 %443
    %445 = vrot.lane.b32.xlu0 %v430, 19
    %v446 = vpop.permute.xlu0 %445
    %447 = vrot.lane.b32.xlu0 %v431, 19
    %v448 = vpop.permute.xlu0 %447
    %449 = vrot.lane.b32.xlu0 %v432, 19
    %v450 = vpop.permute.xlu0 %449
    %451 = vrot.lane.b32.xlu0 %v433, 19
    %v452 = vpop.permute.xlu0 %451
    %v453 = vsel %vm57, %v450, %v452
    %v454 = vsel %vm57, %v448, %v450
    %v455 = vsel %vm57, %v446, %v448
    %v456 = vsel %vm57, %v444, %v446
    %v457 = vsel %vm57, %v442, %v444
    %v458 = vsel %vm57, %v452, %v442
    %459 = vrot.lane.b32.xlu0 %v428, 18
    %v460 = vpop.permute.xlu0 %459
    %461 = vrot.lane.b32.xlu0 %v429, 18
    %v462 = vpop.permute.xlu0 %461
    %463 = vrot.lane.b32.xlu0 %v430, 18
    %v464 = vpop.permute.xlu0 %463
    %465 = vrot.lane.b32.xlu0 %v431, 18
    %v466 = vpop.permute.xlu0 %465
    %467 = vrot.lane.b32.xlu0 %v432, 18
    %v468 = vpop.permute.xlu0 %467
    %469 = vrot.lane.b32.xlu0 %v433, 18
    %v470 = vpop.permute.xlu0 %469
    %v471 = vsel %vm76, %v468, %v470
    %v472 = vsel %vm76, %v466, %v468
    %v473 = vsel %vm76, %v464, %v466
    %v474 = vsel %vm76, %v462, %v464
    %v475 = vsel %vm76, %v460, %v462
    %v476 = vsel %vm76, %v470, %v460
    %477 = vrot.lane.b32.xlu0 %v428, 17
    %v478 = vpop.permute.xlu0 %477
    %479 = vrot.lane.b32.xlu0 %v429, 17
    %v480 = vpop.permute.xlu0 %479
    %481 = vrot.lane.b32.xlu0 %v430, 17
    %v482 = vpop.permute.xlu0 %481
    %483 = vrot.lane.b32.xlu0 %v431, 17
    %v484 = vpop.permute.xlu0 %483
    %485 = vrot.lane.b32.xlu0 %v432, 17
    %v486 = vpop.permute.xlu0 %485
    %487 = vrot.lane.b32.xlu0 %v433, 17
    %v488 = vpop.permute.xlu0 %487
    %v489 = vsel %vm95, %v486, %v488
    %v490 = vsel %vm95, %v484, %v486
    %v491 = vsel %vm95, %v482, %v484
    %v492 = vsel %vm95, %v480, %v482
    %v493 = vsel %vm95, %v478, %v480
    %v494 = vsel %vm95, %v488, %v478
    %495 = vrot.lane.b32.xlu0 %v428, 1
    %v496 = vpop.permute.xlu0 %495
    %497 = vrot.lane.b32.xlu0 %v429, 1
    %v498 = vpop.permute.xlu0 %497
    %499 = vrot.lane.b32.xlu0 %v430, 1
    %v500 = vpop.permute.xlu0 %499
    %501 = vrot.lane.b32.xlu0 %v431, 1
    %v502 = vpop.permute.xlu0 %501
    %503 = vrot.lane.b32.xlu0 %v432, 1
    %v504 = vpop.permute.xlu0 %503
    %505 = vrot.lane.b32.xlu0 %v433, 1
    %v506 = vpop.permute.xlu0 %505
    %v507 = vsel %vm114, %v504, %v506
    %v508 = vsel %vm114, %v502, %v504
    %v509 = vsel %vm114, %v500, %v502
    %v510 = vsel %vm114, %v498, %v500
    %v511 = vsel %vm114, %v496, %v498
    %v512 = vsel %vm114, %v506, %v496
    %513 = vrot.lane.b32.xlu0 %v428, 127
    %v514 = vpop.permute.xlu0 %513
    %515 = vrot.lane.b32.xlu0 %v429, 127
    %v516 = vpop.permute.xlu0 %515
    %517 = vrot.lane.b32.xlu0 %v430, 127
    %v518 = vpop.permute.xlu0 %517
    %519 = vrot.lane.b32.xlu0 %v431, 127
    %v520 = vpop.permute.xlu0 %519
    %521 = vrot.lane.b32.xlu0 %v432, 127
    %v522 = vpop.permute.xlu0 %521
    %523 = vrot.lane.b32.xlu0 %v433, 127
    %v524 = vpop.permute.xlu0 %523
    %v525 = vsel %vm133, %v522, %v524
    %v526 = vsel %vm133, %v520, %v522
    %v527 = vsel %vm133, %v518, %v520
    %v528 = vsel %vm133, %v516, %v518
    %v529 = vsel %vm133, %v514, %v516
    %v530 = vsel %vm133, %v524, %v514
    %531 = vrot.lane.b32.xlu0 %v428, 111
    %v532 = vpop.permute.xlu0 %531
    %533 = vrot.lane.b32.xlu0 %v429, 111
    %v534 = vpop.permute.xlu0 %533
    %535 = vrot.lane.b32.xlu0 %v430, 111
    %v536 = vpop.permute.xlu0 %535
    %537 = vrot.lane.b32.xlu0 %v431, 111
    %v538 = vpop.permute.xlu0 %537
    %539 = vrot.lane.b32.xlu0 %v432, 111
    %v540 = vpop.permute.xlu0 %539
    %541 = vrot.lane.b32.xlu0 %v433, 111
    %v542 = vpop.permute.xlu0 %541
    %v543 = vsel %vm152, %v540, %v542
    %v544 = vsel %vm152, %v538, %v540
    %v545 = vsel %vm152, %v536, %v538
    %v546 = vsel %vm152, %v534, %v536
    %v547 = vsel %vm152, %v532, %v534
    %v548 = vsel %vm152, %v542, %v532
    %549 = vrot.lane.b32.xlu0 %v428, 110
    %v550 = vpop.permute.xlu0 %549
    %551 = vrot.lane.b32.xlu0 %v429, 110
    %v552 = vpop.permute.xlu0 %551
    %553 = vrot.lane.b32.xlu0 %v430, 110
    %v554 = vpop.permute.xlu0 %553
    %555 = vrot.lane.b32.xlu0 %v431, 110
    %v556 = vpop.permute.xlu0 %555
    %557 = vrot.lane.b32.xlu0 %v432, 110
    %v558 = vpop.permute.xlu0 %557
    %559 = vrot.lane.b32.xlu0 %v433, 110
    %v560 = vpop.permute.xlu0 %559
    %v561 = vsel %vm171, %v558, %v560
    %v562 = vsel %vm171, %v556, %v558
    %v563 = vsel %vm171, %v554, %v556
    %v564 = vsel %vm171, %v552, %v554
    %v565 = vsel %vm171, %v550, %v552
    %v566 = vsel %vm171, %v560, %v550
    %567 = vrot.lane.b32.xlu0 %v428, 109
    %v568 = vpop.permute.xlu0 %567
    %569 = vrot.lane.b32.xlu0 %v429, 109
    %v570 = vpop.permute.xlu0 %569
    %571 = vrot.lane.b32.xlu0 %v430, 109
    %v572 = vpop.permute.xlu0 %571
    %573 = vrot.lane.b32.xlu0 %v431, 109
    %v574 = vpop.permute.xlu0 %573
    %575 = vrot.lane.b32.xlu0 %v432, 109
    %v576 = vpop.permute.xlu0 %575
    %577 = vrot.lane.b32.xlu0 %v433, 109
    %v578 = vpop.permute.xlu0 %577
    %v579 = vsel %vm190, %v576, %v578
    %v580 = vsel %vm190, %v574, %v576
    %v581 = vsel %vm190, %v572, %v574
    %v582 = vsel %vm190, %v570, %v572
    %v583 = vsel %vm190, %v568, %v570
    %v584 = vsel %vm190, %v578, %v568
    %v585 = vpack.c.bf16 %v476, %v458
    %v586 = vpack.c.bf16 %v475, %v457
    %v587 = vpack.c.bf16 %v474, %v456
    %v588 = vpack.c.bf16 %v473, %v455
    %v589 = vpack.c.bf16 %v472, %v454
    %v590 = vpack.c.bf16 %v471, %v453
    %v591 = vpack.c.bf16 %v512, %v494
    %v592 = vpack.c.bf16 %v511, %v493
    %v593 = vpack.c.bf16 %v510, %v492
    %v594 = vpack.c.bf16 %v509, %v491
    %v595 = vpack.c.bf16 %v508, %v490
    %v596 = vpack.c.bf16 %v507, %v489
    %v597 = vpack.c.bf16 %v529, %v428
    %v598 = vpack.c.bf16 %v528, %v429
    %v599 = vpack.c.bf16 %v527, %v430
    %v600 = vpack.c.bf16 %v526, %v431
    %v601 = vpack.c.bf16 %v525, %v432
    %v602 = vpack.c.bf16 %v530, %v433
    %v603 = vpack.c.bf16 %v565, %v547
    %v604 = vpack.c.bf16 %v564, %v546
    %v605 = vpack.c.bf16 %v563, %v545
    %v606 = vpack.c.bf16 %v562, %v544
    %v607 = vpack.c.bf16 %v561, %v543
    %v608 = vpack.c.bf16 %v566, %v548
    %v609 = vpack.c.bf16 %v583, %v583
    %v610 = vpack.c.bf16 %v582, %v582
    %v611 = vpack.c.bf16 %v581, %v581
    %v612 = vpack.c.bf16 %v580, %v580
    %v613 = vpack.c.bf16 %v579, %v579
    %v614 = vpack.c.bf16 %v584, %v584
    %v616 = vsel %vm233, %v440, 0
    %v619 = vsel %vm237, %v609, 0
    %v622 = vsel %vm237, %v610, 0
    %v625 = vsel %vm237, %v611, 0
    %v628 = vsel %vm237, %v612, 0
    %v631 = vsel %vm237, %v613, 0
    %v634 = vsel %vm237, %v614, 0
    %636 = vmatprep.subr.bf16.mxu0 %v586
    %637 = vmatpush1.bf16.msra.mxu0 %v585
    %638 = vmatprep.subr.bf16.mxu0 %v592
    %639 = vmatpush1.bf16.msra.mxu0 %v591
    %640 = vmatprep.subr.bf16.mxu0 %v598
    %641 = vmatpush1.bf16.msra.mxu0 %v597
    %642 = vmatprep.subr.bf16.mxu0 %v604
    %643 = vmatpush1.bf16.msra.mxu0 %v603
    %644 = vmatprep.subr.bf16.mxu0 %v622
    %645 = vmatpush1.bf16.msra.mxu0 %v619
    %646 = vmatprep.subr.bf16.mxu0 0
    %647 = vmatpush1.bf16.msra.mxu0 0
    %648 = vmatprep.subr.bf16.mxu0 0
    %649 = vmatpush1.bf16.msra.mxu0 0
    %650 = vmatprep.subr.bf16.mxu0 0
    %651 = vmatpush1.bf16.msra.mxu0 0
    %652 = vmatprep.subr.bf16.mxu0 0
    %653 = vmatpush1.bf16.msra.mxu0 0
    %654 = vmatprep.subr.bf16.mxu0 0
    %655 = vmatpush1.bf16.msra.mxu0 0
    %656 = vmatprep.subr.bf16.mxu0 0
    %657 = vmatpush1.bf16.msra.mxu0 0
    %658 = vmatprep.subr.bf16.mxu0 0
    %659 = vmatpush1.bf16.msra.mxu0 0
    %660 = vmatprep.subr.bf16.mxu0 0
    %661 = vmatpush1.bf16.msra.mxu0 0
    %662 = vmatprep.subr.bf16.mxu0 0
    %663 = vmatpush1.bf16.msra.mxu0 0
    %664 = vmatprep.subr.bf16.mxu0 0
    %665 = vmatpush1.bf16.msra.mxu0 0
    %666 = vmatprep.subr.bf16.mxu0 0
    %667 = vmatpush1.bf16.msra.mxu0 0
    %668 = vmatprep.mubr.bf16.mxu0 0
    %669 = vmatmul.mubr.bf16.gmra.mrb[0].mxu0 %v616
    %v670 = vpop.f32.mrb[0].mxu0
    %v671 = vadd.f32 0.0, %v670
    %v672 = vpop.f32.mrb[0].mxu0
    %v673 = vadd.f32 0.0, %v672
    %v674 = vpop.f32.mrb[0].mxu0
    %v675 = vpop.f32.mrb[0].mxu0
    %676 = vdwg.mxu0
    %677 = vmatprep.subr.bf16.mxu0 %v588
    %678 = vmatpush1.bf16.msra.mxu0 %v587
    %679 = vmatprep.subr.bf16.mxu0 %v594
    %680 = vmatpush1.bf16.msra.mxu0 %v593
    %681 = vmatprep.subr.bf16.mxu0 %v600
    %682 = vmatpush1.bf16.msra.mxu0 %v599
    %683 = vmatprep.subr.bf16.mxu0 %v606
    %684 = vmatpush1.bf16.msra.mxu0 %v605
    %685 = vmatprep.subr.bf16.mxu0 %v628
    %686 = vmatpush1.bf16.msra.mxu0 %v625
    %687 = vmatprep.subr.bf16.mxu0 0
    %688 = vmatpush1.bf16.msra.mxu0 0
    %689 = vmatprep.subr.bf16.mxu0 0
    %690 = vmatpush1.bf16.msra.mxu0 0
    %691 = vmatprep.subr.bf16.mxu0 0
    %692 = vmatpush1.bf16.msra.mxu0 0
    %693 = vmatprep.subr.bf16.mxu0 0
    %694 = vmatpush1.bf16.msra.mxu0 0
    %695 = vmatprep.subr.bf16.mxu0 0
    %696 = vmatpush1.bf16.msra.mxu0 0
    %697 = vmatprep.subr.bf16.mxu0 0
    %698 = vmatpush1.bf16.msra.mxu0 0
    %699 = vmatprep.subr.bf16.mxu0 0
    %700 = vmatpush1.bf16.msra.mxu0 0
    %701 = vmatprep.subr.bf16.mxu0 0
    %702 = vmatpush1.bf16.msra.mxu0 0
    %703 = vmatprep.subr.bf16.mxu0 0
    %704 = vmatpush1.bf16.msra.mxu0 0
    %705 = vmatprep.subr.bf16.mxu0 0
    %706 = vmatpush1.bf16.msra.mxu0 0
    %707 = vmatprep.subr.bf16.mxu0 0
    %708 = vmatpush1.bf16.msra.mxu0 0
    %709 = vmatprep.mubr.bf16.mxu0 0
    %710 = vmatmul.mubr.bf16.gmra.mrb[0].mxu0 %v616
    %v711 = vpop.f32.mrb[0].mxu0
    %v712 = vadd.f32 0.0, %v711
    %v713 = vpop.f32.mrb[0].mxu0
    %v714 = vadd.f32 0.0, %v713
    %v715 = vpop.f32.mrb[0].mxu0
    %v716 = vpop.f32.mrb[0].mxu0
    %717 = vdwg.mxu0
    %718 = vmatprep.subr.bf16.mxu0 %v590
    %719 = vmatpush1.bf16.msra.mxu0 %v589
    %720 = vmatprep.subr.bf16.mxu0 %v596
    %721 = vmatpush1.bf16.msra.mxu0 %v595
    %722 = vmatprep.subr.bf16.mxu0 %v602
    %723 = vmatpush1.bf16.msra.mxu0 %v601
    %724 = vmatprep.subr.bf16.mxu0 %v608
    %725 = vmatpush1.bf16.msra.mxu0 %v607
    %726 = vmatprep.subr.bf16.mxu0 %v634
    %727 = vmatpush1.bf16.msra.mxu0 %v631
    %728 = vmatprep.subr.bf16.mxu0 0
    %729 = vmatpush1.bf16.msra.mxu0 0
    %730 = vmatprep.subr.bf16.mxu0 0
    %731 = vmatpush1.bf16.msra.mxu0 0
    %732 = vmatprep.subr.bf16.mxu0 0
    %733 = vmatpush1.bf16.msra.mxu0 0
    %734 = vmatprep.subr.bf16.mxu0 0
    %735 = vmatpush1.bf16.msra.mxu0 0
    %736 = vmatprep.subr.bf16.mxu0 0
    %737 = vmatpush1.bf16.msra.mxu0 0
    %738 = vmatprep.subr.bf16.mxu0 0
    %739 = vmatpush1.bf16.msra.mxu0 0
    %740 = vmatprep.subr.bf16.mxu0 0
    %741 = vmatpush1.bf16.msra.mxu0 0
    %742 = vmatprep.subr.bf16.mxu0 0
    %743 = vmatpush1.bf16.msra.mxu0 0
    %744 = vmatprep.subr.bf16.mxu0 0
    %745 = vmatpush1.bf16.msra.mxu0 0
    %746 = vmatprep.subr.bf16.mxu0 0
    %747 = vmatpush1.bf16.msra.mxu0 0
    %748 = vmatprep.subr.bf16.mxu0 0
    %749 = vmatpush1.bf16.msra.mxu0 0
    %750 = vmatprep.mubr.bf16.mxu0 0
    %751 = vmatmul.mubr.bf16.gmra.mrb[0].mxu0 %v616
    %v752 = vpop.f32.mrb[0].mxu0
    %v753 = vadd.f32 0.0, %v752
    %v754 = vpop.f32.mrb[0].mxu0
    %v755 = vadd.f32 0.0, %v754
    %v756 = vpop.f32.mrb[0].mxu0
    %v757 = vpop.f32.mrb[0].mxu0
    %758 = vdwg.mxu0
    %vm759 = vcmp.ge.f32.partialorder %v671, 0.0
    %vm760 = vcmp.ge.f32.partialorder %v673, 0.0
    %vm761 = vcmp.ge.f32.partialorder %v712, 0.0
    %vm762 = vcmp.ge.f32.partialorder %v714, 0.0
    %vm763 = vcmp.ge.f32.partialorder %v753, 0.0
    %vm764 = vcmp.ge.f32.partialorder %v755, 0.0
    %v765 = vmul.f32 %v671, 0.01
    %v766 = vmul.f32 %v673, 0.01
    %v767 = vmul.f32 %v712, 0.01
    %v768 = vmul.f32 %v714, 0.01
    %v769 = vmul.f32 %v753, 0.01
    %v770 = vmul.f32 %v755, 0.01
    %v771 = vsel %vm759, %v671, %v765
    %v772 = vsel %vm760, %v673, %v766
    %v773 = vsel %vm761, %v712, %v767
    %v774 = vsel %vm762, %v714, %v768
    %v775 = vsel %vm763, %v753, %v769
    %v776 = vsel %vm764, %v755, %v770
    %v777 = vld [vmem:[%s5] sm:$0xff]
    %779 = vset.pattern.permute.xlu0 0
    %780 = vperm.xlu0 %779, %v777
    %v781 = vpop.permute.xlu0 %780
    %v783 = vmul.f32 %v771, %v781
    %v784 = vmul.f32 %v772, %v781
    %v785 = vmul.f32 %v773, %v781
    %v786 = vmul.f32 %v774, %v781
    %v787 = vmul.f32 %v775, %v781
    %v788 = vmul.f32 %v776, %v781
    %v789 = vld [vmem:[%s6] sm:$0xff]
    %791 = vset.pattern.permute.xlu0 0
    %792 = vperm.xlu0 %791, %v789
    %v793 = vpop.permute.xlu0 %792
    %v795 = vadd.f32 %v783, %v793
    %v796 = vadd.f32 %v784, %v793
    %v797 = vadd.f32 %v785, %v793
    %v798 = vadd.f32 %v786, %v793
    %v799 = vadd.f32 %v787, %v793
    %v800 = vadd.f32 %v788, %v793
    %v801 = vmul.f32 %v795, %v401
    %v802 = vmul.f32 %v796, %v405
    %v803 = vmul.f32 %v797, %v409
    %v804 = vmul.f32 %v798, %v413
    %v805 = vmul.f32 %v799, %v417
    %v806 = vmul.f32 %v800, %v421
    %s807 = scalar_lea.vmem %s4, 4
    %v808 = vld [vmem:[%s807] sm:$0xf]
    %809 = vrot.lane.b32.xlu0 %v801, 19
    %v810 = vpop.permute.xlu0 %809
    %811 = vrot.lane.b32.xlu0 %v802, 19
    %v812 = vpop.permute.xlu0 %811
    %813 = vrot.lane.b32.xlu0 %v803, 19
    %v814 = vpop.permute.xlu0 %813
    %815 = vrot.lane.b32.xlu0 %v804, 19
    %v816 = vpop.permute.xlu0 %815
    %817 = vrot.lane.b32.xlu0 %v805, 19
    %v818 = vpop.permute.xlu0 %817
    %819 = vrot.lane.b32.xlu0 %v806, 19
    %v820 = vpop.permute.xlu0 %819
    %v821 = vsel %vm57, %v818, %v820
    %v822 = vsel %vm57, %v816, %v818
    %v823 = vsel %vm57, %v814, %v816
    %v824 = vsel %vm57, %v812, %v814
    %v825 = vsel %vm57, %v810, %v812
    %v826 = vsel %vm57, %v820, %v810
    %827 = vrot.lane.b32.xlu0 %v801, 18
    %v828 = vpop.permute.xlu0 %827
    %829 = vrot.lane.b32.xlu0 %v802, 18
    %v830 = vpop.permute.xlu0 %829
    %831 = vrot.lane.b32.xlu0 %v803, 18
    %v832 = vpop.permute.xlu0 %831
    %833 = vrot.lane.b32.xlu0 %v804, 18
    %v834 = vpop.permute.xlu0 %833
    %835 = vrot.lane.b32.xlu0 %v805, 18
    %v836 = vpop.permute.xlu0 %835
    %837 = vrot.lane.b32.xlu0 %v806, 18
    %v838 = vpop.permute.xlu0 %837
    %v839 = vsel %vm76, %v836, %v838
    %v840 = vsel %vm76, %v834, %v836
    %v841 = vsel %vm76, %v832, %v834
    %v842 = vsel %vm76, %v830, %v832
    %v843 = vsel %vm76, %v828, %v830
    %v844 = vsel %vm76, %v838, %v828
    %845 = vrot.lane.b32.xlu0 %v801, 17
    %v846 = vpop.permute.xlu0 %845
    %847 = vrot.lane.b32.xlu0 %v802, 17
    %v848 = vpop.permute.xlu0 %847
    %849 = vrot.lane.b32.xlu0 %v803, 17
    %v850 = vpop.permute.xlu0 %849
    %851 = vrot.lane.b32.xlu0 %v804, 17
    %v852 = vpop.permute.xlu0 %851
    %853 = vrot.lane.b32.xlu0 %v805, 17
    %v854 = vpop.permute.xlu0 %853
    %855 = vrot.lane.b32.xlu0 %v806, 17
    %v856 = vpop.permute.xlu0 %855
    %v857 = vsel %vm95, %v854, %v856
    %v858 = vsel %vm95, %v852, %v854
    %v859 = vsel %vm95, %v850, %v852
    %v860 = vsel %vm95, %v848, %v850
    %v861 = vsel %vm95, %v846, %v848
    %v862 = vsel %vm95, %v856, %v846
    %863 = vrot.lane.b32.xlu0 %v801, 1
    %v864 = vpop.permute.xlu0 %863
    %865 = vrot.lane.b32.xlu0 %v802, 1
    %v866 = vpop.permute.xlu0 %865
    %867 = vrot.lane.b32.xlu0 %v803, 1
    %v868 = vpop.permute.xlu0 %867
    %869 = vrot.lane.b32.xlu0 %v804, 1
    %v870 = vpop.permute.xlu0 %869
    %871 = vrot.lane.b32.xlu0 %v805, 1
    %v872 = vpop.permute.xlu0 %871
    %873 = vrot.lane.b32.xlu0 %v806, 1
    %v874 = vpop.permute.xlu0 %873
    %v875 = vsel %vm114, %v872, %v874
    %v876 = vsel %vm114, %v870, %v872
    %v877 = vsel %vm114, %v868, %v870
    %v878 = vsel %vm114, %v866, %v868
    %v879 = vsel %vm114, %v864, %v866
    %v880 = vsel %vm114, %v874, %v864
    %881 = vrot.lane.b32.xlu0 %v801, 127
    %v882 = vpop.permute.xlu0 %881
    %883 = vrot.lane.b32.xlu0 %v802, 127
    %v884 = vpop.permute.xlu0 %883
    %885 = vrot.lane.b32.xlu0 %v803, 127
    %v886 = vpop.permute.xlu0 %885
    %887 = vrot.lane.b32.xlu0 %v804, 127
    %v888 = vpop.permute.xlu0 %887
    %889 = vrot.lane.b32.xlu0 %v805, 127
    %v890 = vpop.permute.xlu0 %889
    %891 = vrot.lane.b32.xlu0 %v806, 127
    %v892 = vpop.permute.xlu0 %891
    %v893 = vsel %vm133, %v890, %v892
    %v894 = vsel %vm133, %v888, %v890
    %v895 = vsel %vm133, %v886, %v888
    %v896 = vsel %vm133, %v884, %v886
    %v897 = vsel %vm133, %v882, %v884
    %v898 = vsel %vm133, %v892, %v882
    %899 = vrot.lane.b32.xlu0 %v801, 111
    %v900 = vpop.permute.xlu0 %899
    %901 = vrot.lane.b32.xlu0 %v802, 111
    %v902 = vpop.permute.xlu0 %901
    %903 = vrot.lane.b32.xlu0 %v803, 111
    %v904 = vpop.permute.xlu0 %903
    %905 = vrot.lane.b32.xlu0 %v804, 111
    %v906 = vpop.permute.xlu0 %905
    %907 = vrot.lane.b32.xlu0 %v805, 111
    %v908 = vpop.permute.xlu0 %907
    %909 = vrot.lane.b32.xlu0 %v806, 111
    %v910 = vpop.permute.xlu0 %909
    %v911 = vsel %vm152, %v908, %v910
    %v912 = vsel %vm152, %v906, %v908
    %v913 = vsel %vm152, %v904, %v906
    %v914 = vsel %vm152, %v902, %v904
    %v915 = vsel %vm152, %v900, %v902
    %v916 = vsel %vm152, %v910, %v900
    %917 = vrot.lane.b32.xlu0 %v801, 110
    %v918 = vpop.permute.xlu0 %917
    %919 = vrot.lane.b32.xlu0 %v802, 110
    %v920 = vpop.permute.xlu0 %919
    %921 = vrot.lane.b32.xlu0 %v803, 110
    %v922 = vpop.permute.xlu0 %921
    %923 = vrot.lane.b32.xlu0 %v804, 110
    %v924 = vpop.permute.xlu0 %923
    %925 = vrot.lane.b32.xlu0 %v805, 110
    %v926 = vpop.permute.xlu0 %925
    %927 = vrot.lane.b32.xlu0 %v806, 110
    %v928 = vpop.permute.xlu0 %927
    %v929 = vsel %vm171, %v926, %v928
    %v930 = vsel %vm171, %v924, %v926
    %v931 = vsel %vm171, %v922, %v924
    %v932 = vsel %vm171, %v920, %v922
    %v933 = vsel %vm171, %v918, %v920
    %v934 = vsel %vm171, %v928, %v918
    %935 = vrot.lane.b32.xlu0 %v801, 109
    %v936 = vpop.permute.xlu0 %935
    %937 = vrot.lane.b32.xlu0 %v802, 109
    %v938 = vpop.permute.xlu0 %937
    %939 = vrot.lane.b32.xlu0 %v803, 109
    %v940 = vpop.permute.xlu0 %939
    %941 = vrot.lane.b32.xlu0 %v804, 109
    %v942 = vpop.permute.xlu0 %941
    %943 = vrot.lane.b32.xlu0 %v805, 109
    %v944 = vpop.permute.xlu0 %943
    %945 = vrot.lane.b32.xlu0 %v806, 109
    %v946 = vpop.permute.xlu0 %945
    %v947 = vsel %vm190, %v944, %v946
    %v948 = vsel %vm190, %v942, %v944
    %v949 = vsel %vm190, %v940, %v942
    %v950 = vsel %vm190, %v938, %v940
    %v951 = vsel %vm190, %v936, %v938
    %v952 = vsel %vm190, %v946, %v936
    %v953 = vpack.c.bf16 %v844, %v826
    %v954 = vpack.c.bf16 %v843, %v825
    %v955 = vpack.c.bf16 %v842, %v824
    %v956 = vpack.c.bf16 %v841, %v823
    %v957 = vpack.c.bf16 %v840, %v822
    %v958 = vpack.c.bf16 %v839, %v821
    %v959 = vpack.c.bf16 %v880, %v862
    %v960 = vpack.c.bf16 %v879, %v861
    %v961 = vpack.c.bf16 %v878, %v860
    %v962 = vpack.c.bf16 %v877, %v859
    %v963 = vpack.c.bf16 %v876, %v858
    %v964 = vpack.c.bf16 %v875, %v857
    %v965 = vpack.c.bf16 %v897, %v801
    %v966 = vpack.c.bf16 %v896, %v802
    %v967 = vpack.c.bf16 %v895, %v803
    %v968 = vpack.c.bf16 %v894, %v804
    %v969 = vpack.c.bf16 %v893, %v805
    %v970 = vpack.c.bf16 %v898, %v806
    %v971 = vpack.c.bf16 %v933, %v915
    %v972 = vpack.c.bf16 %v932, %v914
    %v973 = vpack.c.bf16 %v931, %v913
    %v974 = vpack.c.bf16 %v930, %v912
    %v975 = vpack.c.bf16 %v929, %v911
    %v976 = vpack.c.bf16 %v934, %v916
    %v977 = vpack.c.bf16 %v951, %v951
    %v978 = vpack.c.bf16 %v950, %v950
    %v979 = vpack.c.bf16 %v949, %v949
    %v980 = vpack.c.bf16 %v948, %v948
    %v981 = vpack.c.bf16 %v947, %v947
    %v982 = vpack.c.bf16 %v952, %v952
    %v984 = vsel %vm233, %v808, 0
    %v987 = vsel %vm237, %v977, 0
    %v990 = vsel %vm237, %v978, 0
    %v993 = vsel %vm237, %v979, 0
    %v996 = vsel %vm237, %v980, 0
    %v999 = vsel %vm237, %v981, 0
    %v1002 = vsel %vm237, %v982, 0
    %1004 = vmatprep.subr.bf16.mxu0 %v954
    %1005 = vmatpush1.bf16.msra.mxu0 %v953
    %1006 = vmatprep.subr.bf16.mxu0 %v960
    %1007 = vmatpush1.bf16.msra.mxu0 %v959
    %1008 = vmatprep.subr.bf16.mxu0 %v966
    %1009 = vmatpush1.bf16.msra.mxu0 %v965
    %1010 = vmatprep.subr.bf16.mxu0 %v972
    %1011 = vmatpush1.bf16.msra.mxu0 %v971
    %1012 = vmatprep.subr.bf16.mxu0 %v990
    %1013 = vmatpush1.bf16.msra.mxu0 %v987
    %1014 = vmatprep.subr.bf16.mxu0 0
    %1015 = vmatpush1.bf16.msra.mxu0 0
    %1016 = vmatprep.subr.bf16.mxu0 0
    %1017 = vmatpush1.bf16.msra.mxu0 0
    %1018 = vmatprep.subr.bf16.mxu0 0
    %1019 = vmatpush1.bf16.msra.mxu0 0
    %1020 = vmatprep.subr.bf16.mxu0 0
    %1021 = vmatpush1.bf16.msra.mxu0 0
    %1022 = vmatprep.subr.bf16.mxu0 0
    %1023 = vmatpush1.bf16.msra.mxu0 0
    %1024 = vmatprep.subr.bf16.mxu0 0
    %1025 = vmatpush1.bf16.msra.mxu0 0
    %1026 = vmatprep.subr.bf16.mxu0 0
    %1027 = vmatpush1.bf16.msra.mxu0 0
    %1028 = vmatprep.subr.bf16.mxu0 0
    %1029 = vmatpush1.bf16.msra.mxu0 0
    %1030 = vmatprep.subr.bf16.mxu0 0
    %1031 = vmatpush1.bf16.msra.mxu0 0
    %1032 = vmatprep.subr.bf16.mxu0 0
    %1033 = vmatpush1.bf16.msra.mxu0 0
    %1034 = vmatprep.subr.bf16.mxu0 0
    %1035 = vmatpush1.bf16.msra.mxu0 0
    %1036 = vmatprep.mubr.bf16.mxu0 0
    %1037 = vmatmul.mubr.bf16.gmra.mrb[0].mxu0 %v984
    %v1038 = vpop.f32.mrb[0].mxu0
    %v1039 = vadd.f32 0.0, %v1038
    %v1040 = vpop.f32.mrb[0].mxu0
    %v1041 = vadd.f32 0.0, %v1040
    %v1042 = vpop.f32.mrb[0].mxu0
    %v1043 = vpop.f32.mrb[0].mxu0
    %1044 = vdwg.mxu0
    %1045 = vmatprep.subr.bf16.mxu0 %v956
    %1046 = vmatpush1.bf16.msra.mxu0 %v955
    %1047 = vmatprep.subr.bf16.mxu0 %v962
    %1048 = vmatpush1.bf16.msra.mxu0 %v961
    %1049 = vmatprep.subr.bf16.mxu0 %v968
    %1050 = vmatpush1.bf16.msra.mxu0 %v967
    %1051 = vmatprep.subr.bf16.mxu0 %v974
    %1052 = vmatpush1.bf16.msra.mxu0 %v973
    %1053 = vmatprep.subr.bf16.mxu0 %v996
    %1054 = vmatpush1.bf16.msra.mxu0 %v993
    %1055 = vmatprep.subr.bf16.mxu0 0
    %1056 = vmatpush1.bf16.msra.mxu0 0
    %1057 = vmatprep.subr.bf16.mxu0 0
    %1058 = vmatpush1.bf16.msra.mxu0 0
    %1059 = vmatprep.subr.bf16.mxu0 0
    %1060 = vmatpush1.bf16.msra.mxu0 0
    %1061 = vmatprep.subr.bf16.mxu0 0
    %1062 = vmatpush1.bf16.msra.mxu0 0
    %1063 = vmatprep.subr.bf16.mxu0 0
    %1064 = vmatpush1.bf16.msra.mxu0 0
    %1065 = vmatprep.subr.bf16.mxu0 0
    %1066 = vmatpush1.bf16.msra.mxu0 0
    %1067 = vmatprep.subr.bf16.mxu0 0
    %1068 = vmatpush1.bf16.msra.mxu0 0
    %1069 = vmatprep.subr.bf16.mxu0 0
    %1070 = vmatpush1.bf16.msra.mxu0 0
    %1071 = vmatprep.subr.bf16.mxu0 0
    %1072 = vmatpush1.bf16.msra.mxu0 0
    %1073 = vmatprep.subr.bf16.mxu0 0
    %1074 = vmatpush1.bf16.msra.mxu0 0
    %1075 = vmatprep.subr.bf16.mxu0 0
    %1076 = vmatpush1.bf16.msra.mxu0 0
    %1077 = vmatprep.mubr.bf16.mxu0 0
    %1078 = vmatmul.mubr.bf16.gmra.mrb[0].mxu0 %v984
    %v1079 = vpop.f32.mrb[0].mxu0
    %v1080 = vadd.f32 0.0, %v1079
    %v1081 = vpop.f32.mrb[0].mxu0
    %v1082 = vadd.f32 0.0, %v1081
    %v1083 = vpop.f32.mrb[0].mxu0
    %v1084 = vpop.f32.mrb[0].mxu0
    %1085 = vdwg.mxu0
    %1086 = vmatprep.subr.bf16.mxu0 %v958
    %1087 = vmatpush1.bf16.msra.mxu0 %v957
    %1088 = vmatprep.subr.bf16.mxu0 %v964
    %1089 = vmatpush1.bf16.msra.mxu0 %v963
    %1090 = vmatprep.subr.bf16.mxu0 %v970
    %1091 = vmatpush1.bf16.msra.mxu0 %v969
    %1092 = vmatprep.subr.bf16.mxu0 %v976
    %1093 = vmatpush1.bf16.msra.mxu0 %v975
    %1094 = vmatprep.subr.bf16.mxu0 %v1002
    %1095 = vmatpush1.bf16.msra.mxu0 %v999
    %1096 = vmatprep.subr.bf16.mxu0 0
    %1097 = vmatpush1.bf16.msra.mxu0 0
    %1098 = vmatprep.subr.bf16.mxu0 0
    %1099 = vmatpush1.bf16.msra.mxu0 0
    %1100 = vmatprep.subr.bf16.mxu0 0
    %1101 = vmatpush1.bf16.msra.mxu0 0
    %1102 = vmatprep.subr.bf16.mxu0 0
    %1103 = vmatpush1.bf16.msra.mxu0 0
    %1104 = vmatprep.subr.bf16.mxu0 0
    %1105 = vmatpush1.bf16.msra.mxu0 0
    %1106 = vmatprep.subr.bf16.mxu0 0
    %1107 = vmatpush1.bf16.msra.mxu0 0
    %1108 = vmatprep.subr.bf16.mxu0 0
    %1109 = vmatpush1.bf16.msra.mxu0 0
    %1110 = vmatprep.subr.bf16.mxu0 0
    %1111 = vmatpush1.bf16.msra.mxu0 0
    %1112 = vmatprep.subr.bf16.mxu0 0
    %1113 = vmatpush1.bf16.msra.mxu0 0
    %1114 = vmatprep.subr.bf16.mxu0 0
    %1115 = vmatpush1.bf16.msra.mxu0 0
    %1116 = vmatprep.subr.bf16.mxu0 0
    %1117 = vmatpush1.bf16.msra.mxu0 0
    %1118 = vmatprep.mubr.bf16.mxu0 0
    %1119 = vmatmul.mubr.bf16.gmra.mrb[0].mxu0 %v984
    %v1120 = vpop.f32.mrb[0].mxu0
    %v1121 = vadd.f32 0.0, %v1120
    %v1122 = vpop.f32.mrb[0].mxu0
    %v1123 = vadd.f32 0.0, %v1122
    %v1124 = vpop.f32.mrb[0].mxu0
    %v1125 = vpop.f32.mrb[0].mxu0
    %1126 = vdwg.mxu0
    %vm1127 = vcmp.ge.f32.partialorder %v1039, 0.0
    %vm1128 = vcmp.ge.f32.partialorder %v1041, 0.0
    %vm1129 = vcmp.ge.f32.partialorder %v1080, 0.0
    %vm1130 = vcmp.ge.f32.partialorder %v1082, 0.0
    %vm1131 = vcmp.ge.f32.partialorder %v1121, 0.0
    %vm1132 = vcmp.ge.f32.partialorder %v1123, 0.0
    %v1133 = vmul.f32 %v1039, 0.01
    %v1134 = vmul.f32 %v1041, 0.01
    %v1135 = vmul.f32 %v1080, 0.01
    %v1136 = vmul.f32 %v1082, 0.01
    %v1137 = vmul.f32 %v1121, 0.01
    %v1138 = vmul.f32 %v1123, 0.01
    %v1139 = vsel %vm1127, %v1039, %v1133
    %v1140 = vsel %vm1128, %v1041, %v1134
    %v1141 = vsel %vm1129, %v1080, %v1135
    %v1142 = vsel %vm1130, %v1082, %v1136
    %v1143 = vsel %vm1131, %v1121, %v1137
    %v1144 = vsel %vm1132, %v1123, %v1138
    %s1145 = scalar_lea.vmem %s5, 8
    %v1146 = vld [vmem:[%s1145] sm:$0xff]
    %1148 = vset.pattern.permute.xlu0 0
    %1149 = vperm.xlu0 %1148, %v1146
    %v1150 = vpop.permute.xlu0 %1149
    %v1152 = vmul.f32 %v1139, %v1150
    %v1153 = vmul.f32 %v1140, %v1150
    %v1154 = vmul.f32 %v1141, %v1150
    %v1155 = vmul.f32 %v1142, %v1150
    %v1156 = vmul.f32 %v1143, %v1150
    %v1157 = vmul.f32 %v1144, %v1150
    %s1158 = scalar_lea.vmem %s6, 8
    %v1159 = vld [vmem:[%s1158] sm:$0xff]
    %1161 = vset.pattern.permute.xlu0 0
    %1162 = vperm.xlu0 %1161, %v1159
    %v1163 = vpop.permute.xlu0 %1162
    %v1165 = vadd.f32 %v1152, %v1163
    %v1166 = vadd.f32 %v1153, %v1163
    %v1167 = vadd.f32 %v1154, %v1163
    %v1168 = vadd.f32 %v1155, %v1163
    %v1169 = vadd.f32 %v1156, %v1163
    %v1170 = vadd.f32 %v1157, %v1163
    %v1171 = vmul.f32 %v1165, %v401
    %v1172 = vmul.f32 %v1166, %v405
    %v1173 = vmul.f32 %v1167, %v409
    %v1174 = vmul.f32 %v1168, %v413
    %v1175 = vmul.f32 %v1169, %v417
    %v1176 = vmul.f32 %v1170, %v421
    %1177 = vst [vmem:[#allocation4] sm:$0xff] %v1171
    %1178 = vst [vmem:[#allocation4 + $0x8] sm:$0xff] %v1172
    %1179 = vst [vmem:[#allocation4 + $0x10] sm:$0xff] %v1173
    %1180 = vst [vmem:[#allocation4 + $0x18] sm:$0xff] %v1174
    %1181 = vst [vmem:[#allocation4 + $0x20] sm:$0xff] %v1175
    %1182 = vst [vmem:[#allocation4 + $0x28] sm:$0xff] %v1176
    %v1183 = vadd.f32 %v1171, %v1172
    %v1184 = vadd.f32 %v1183, %v1173
    %1185 = vadd.xlane.f32.xlu0 %v1184
    %v1186 = vpop.xlane.xlu0 %1185
    %vm1187 = vcmp.eq.s32.totalorder %v56, 0
    %v1188 = vsel %vm1187, 1, 0
    %v1189 = vcvt.s32.f32 %v1188
    %v1190 = vmul.f32 %v1186, %v1189
    %v1191 = vadd.f32 %v1190, 0.0
    %v1192 = vadd.f32 %v1174, %v1175
    %v1193 = vadd.f32 %v1192, %v1176
    %1194 = vadd.xlane.f32.xlu0 %v1193
    %v1195 = vpop.xlane.xlu0 %1194
    %vm1196 = vcmp.eq.s32.totalorder %v56, 1
    %v1197 = vsel %vm1196, 1, 0
    %v1198 = vcvt.s32.f32 %v1197
    %v1199 = vmul.f32 %v1195, %v1198
    %v1200 = vadd.f32 %v1191, %v1199
    %v1201 = vmul.f32 %v1200, 0.00390625
    %vm1202 = vcmask 15360
    %1203 = vst.msk [vmem:[%s9] sm:$0xff] %vm1202, %v1201
    // Predicated region
    $region30: #{tpu_custom_call.1} parent=1 // pred_check
      _
    $region31: #{tpu_custom_call.1} parent=1 // pred_check_branch
      %1205 = sbr.rel (0) target = $region33
    $region32: #{tpu_custom_call.1} parent=1 // pred_region
      %s1207 = ssub.s32 768, 768
      %1208 = vsyncadd [#allocation3], %s1207
      %s1210 = sshll.u32 [#allocation2], 4
      %s1211 = int_to_ptr.vmem [resolvable:$true] %s1210
      %1213 = dma.vmem_to_hbm [thread:$0]  %s1211, 768, %s7, [#allocation3]
    $region33: #{tpu_custom_call.1} parent=1 // pred_fallthru
      _
    // Predicated region
    $region34: #{tpu_custom_call.1} parent=1 // pred_check
      _
    $region35: #{tpu_custom_call.1} parent=1 // pred_check_branch
      %1215 = sbr.rel (0) target = $region37
    $region36: #{tpu_custom_call.1} parent=1 // pred_region
      %s1217 = ssub.s32 768, 768
      %1218 = vsyncadd [#allocation5], %s1217
      %s1220 = sshll.u32 [#allocation4], 4
      %s1221 = int_to_ptr.vmem [resolvable:$true] %s1220
      %1223 = dma.vmem_to_hbm [thread:$0]  %s1221, 768, %s8, [#allocation5]
    $region37: #{tpu_custom_call.1} parent=1 // pred_fallthru
      _
    // Predicated region
    $region38: #{tpu_custom_call.1} parent=1 // pred_check
      _
    $region39: #{tpu_custom_call.1} parent=1 // pred_check_branch
      %1225 = sbr.rel (0) target = $region41
    $region40: #{tpu_custom_call.1} parent=1 // pred_region
      _
    $region41: #{tpu_custom_call.1} parent=1 // pred_fallthru
      _
    // Predicated region
    $region42: #{tpu_custom_call.1} parent=1 // pred_check
      _
    $region43: #{tpu_custom_call.1} parent=1 // pred_check_branch
      %1227 = sbr.rel (0) target = $region45
    $region44: #{tpu_custom_call.1} parent=1 // pred_region
      %1228 = dma.done [#allocation3], 768
    $region45: #{tpu_custom_call.1} parent=1 // pred_fallthru
      _
    // Predicated region
    $region46: #{tpu_custom_call.1} parent=1 // pred_check
      _
    $region47: #{tpu_custom_call.1} parent=1 // pred_check_branch
      %1230 = sbr.rel (0) target = $region49
    $region48: #{tpu_custom_call.1} parent=1 // pred_region
      %1231 = dma.done [#allocation5], 768
    $region49: #{tpu_custom_call.1} parent=1 // pred_fallthru
      _
    // Predicated region
    $region50: #{tpu_custom_call.1} parent=1 // pred_check
      _
    $region51: #{tpu_custom_call.1} parent=1 // pred_check_branch
      %1233 = sbr.rel (0) target = $region53
    $region52: #{tpu_custom_call.1} parent=1 // pred_region
      _
    $region53: #{tpu_custom_call.1} parent=1 // pred_fallthru
      _
    %1234 = vsyncpa [#allocation3], 1
    %1235 = vsyncpa [#allocation5], 1

</llo_original>
